<compile_context>
chip_gen: v7x
topology: tpu7x:2x2x1
jax: 0.10.0
libtpu: 0.0.40
codegen_flags: <defaults>
</compile_context>

<pallas_src>
import functools

import jax
import jax.numpy as jnp
from jax.experimental import pallas as pl
from jax.experimental.pallas import tpu as pltpu

N_E = 7        # codebook entries per VQ (n_e)
K_PAD = 8      # codebook size padded to a lane-friendly 8
E_DIM = 128    # embedding dim (lane axis)
N_BR = 3       # branches: mel / pitch / energy
BETA = 0.25    # VectorQuantizer_kmeans default (ResidualVQ2 does NOT override it)


def _pick_tile_budget():
    """Generation-aware batch-tile size + scoped-VMEM request."""
    try:
        vmem = pltpu.get_tpu_info().vmem_capacity_bytes
    except Exception:                       # conservative fallback
        return 1024, 40 * 1024 * 1024
    if vmem >= 96 * 1024 * 1024:            # v5e / v6e: 128 MiB physical VMEM
        return 2048, 64 * 1024 * 1024
    return 1024, 40 * 1024 * 1024           # v7x: 64 MiB physical VMEM


MAX_BLOCK_B, VMEM_LIMIT = _pick_tile_budget()


def _ceil_div(a, b):
    return -(-a // b)


def srvq_kernel(zm_ref, zp_ref, ze_ref, wneg2t_ref, wn_ref, wghi_ref, wglo_ref,
                q_ref, idx_ref, loss_ref, *, b_true):
    """Fused 3-branch, 2-stage residual VQ for one batch tile."""
    blk, d = zm_ref.shape

    def vq_stage(x, stage):
        # x: (blk, 3*d).  |x|^2 dropped: constant per row, argmin unchanged.
        # Single bf16 MXU pass: same input roundings as the plain-JAX / torch
        # distance, so rankings agree except on ~1e-6 ties.
        dist = wn_ref[stage] + jnp.dot(
            x, wneg2t_ref[stage],
            precision=jax.lax.Precision.DEFAULT,
            preferred_element_type=jnp.float32)                       # (blk, 24)
        idxs = []
        for br in range(N_BR):
            d_br = dist[:, K_PAD * br:K_PAD * (br + 1)]               # (blk, 8)
            dmin = jnp.min(d_br, axis=1, keepdims=True)
            iota8 = jax.lax.broadcasted_iota(jnp.int32, d_br.shape, 1)
            # First index achieving the minimum (matches torch/jnp argmin
            # tie-break).  NOTE: an all-NaN row would give idx == K_PAD.
            idxs.append(jnp.min(jnp.where(d_br <= dmin, iota8, K_PAD),
                                axis=1, keepdims=True))               # (blk, 1)
        iota24 = jax.lax.broadcasted_iota(jnp.int32, dist.shape, 1)
        onehot = ((iota24 == idxs[0]) |
                  (iota24 == idxs[1] + K_PAD) |
                  (iota24 == idxs[2] + 2 * K_PAD)).astype(jnp.float32)  # (blk, 24)
        # Exact gather: hi part is bf16-representable, lo is the f32 remainder,
        # so two single-pass matmuls reproduce the f32 codebook rows (~6e-7).
        q = jnp.dot(onehot, wghi_ref[stage],
                    precision=jax.lax.Precision.DEFAULT,
                    preferred_element_type=jnp.float32)
        q = q + jnp.dot(onehot, wglo_ref[stage],
                        precision=jax.lax.Precision.DEFAULT,
                        preferred_element_type=jnp.float32)            # (blk, 3*d)
        return q, idxs

    # Concatenate the three branch latents once (VMEM-only vreg copies).
    z = jnp.concatenate([zm_ref[...], zp_ref[...], ze_ref[...]], axis=1)  # (blk, 3*d)

    q1, idx1 = vq_stage(z, 0)          # stage 1
    r = z - q1                         # residual
    q2, idx2 = vq_stage(r, 1)          # stage 2

    # Write straight into the torch concat layout [q1_m|q2_m|q1_p|q2_p|q1_e|q2_e];
    # every slice is 128-lane aligned, overall a lane-dense 768-wide store.
    for br in range(N_BR):
        q_ref[:, (2 * br) * d:(2 * br + 1) * d] = q1[:, br * d:(br + 1) * d]
        q_ref[:, (2 * br + 1) * d:(2 * br + 2) * d] = q2[:, br * d:(br + 1) * d]

    # All six stage indices packed into ONE int32 per row (4-bit fields,
    # field j = 2*branch + stage), one narrow store per tile.
    packed = jnp.zeros((blk, 1), jnp.int32)
    for br in range(N_BR):
        packed = packed + idx1[br] * (1 << (8 * br)) + idx2[br] * (1 << (8 * br + 4))
    idx_ref[...] = packed

    # Commitment-loss partial sum, masked to valid rows; (q1 - z)^2 == r^2.
    row = pl.program_id(0) * blk + jax.lax.broadcasted_iota(jnp.int32, (blk, 1), 0)
    valid = (row < b_true).astype(jnp.float32)
    sq_rows = (jnp.sum(r * r, axis=1, keepdims=True)
               + jnp.sum((q2 - r) ** 2, axis=1, keepdims=True))
    loss_ref[...] = jnp.full((1, 1, 128), jnp.sum(valid * sq_rows), jnp.float32)


def _srvq3_pallas(zm, zp, ze, wneg2t, wn, wghi, wglo, b_true, block_b, nb):
    b_pad, d = zm.shape
    z_spec = pl.BlockSpec((block_b, d), lambda i: (i, 0))

    def const_spec(arr):
        return pl.BlockSpec(arr.shape, lambda i: (0,) * arr.ndim)

    return pl.pallas_call(
        functools.partial(srvq_kernel, b_true=b_true),
        grid=(nb,),
        in_specs=[z_spec, z_spec, z_spec,
                  const_spec(wneg2t), const_spec(wn),
                  const_spec(wghi), const_spec(wglo)],
        out_specs=(pl.BlockSpec((block_b, 2 * N_BR * d), lambda i: (i, 0)),
                   pl.BlockSpec((block_b, 1), lambda i: (i, 0)),
                   pl.BlockSpec((1, 1, 128), lambda i: (i, 0, 0))),
        out_shape=(
            jax.ShapeDtypeStruct((b_pad, 2 * N_BR * d), jnp.float32),  # quantized
            jax.ShapeDtypeStruct((b_pad, 1), jnp.int32),               # packed indices
            jax.ShapeDtypeStruct((nb, 1, 128), jnp.float32),           # loss partials
        ),
        compiler_params=pltpu.CompilerParams(
            dimension_semantics=("parallel",),
            vmem_limit_bytes=VMEM_LIMIT),
    )(zm, zp, ze, wneg2t, wn, wghi, wglo)


def _prep_codebooks(params):
    # params["RVQi"] = (w_stage1, w_stage2), each (n_e, e_dim) = (7, 128).
    w = jnp.stack([jnp.stack(params["RVQ1"]),
                   jnp.stack(params["RVQ2"]),
                   jnp.stack(params["RVQ3"])]).astype(jnp.float32)    # (3, 2, 7, 128)
    w = jnp.pad(w, ((0, 0), (0, 0), (0, K_PAD - N_E), (0, 0)))        # pad row -> 0
    w = jnp.swapaxes(w, 0, 1)                                         # (2, 3, 8, 128)

    # Block-diagonal fused distance weight (2, 3*128, 3*8), entries = -2 * w^T.
    wneg2t = jnp.zeros((2, N_BR, E_DIM, N_BR, K_PAD), jnp.float32)
    for br in range(N_BR):
        wneg2t = wneg2t.at[:, br, :, br, :].set(-2.0 * jnp.swapaxes(w[:, br], -1, -2))
    wneg2t = wneg2t.reshape(2, N_BR * E_DIM, N_BR * K_PAD)

    # Block-diagonal fused gather weights, split hi/lo for an exact gather
    # with two single-pass (DEFAULT precision) MXU matmuls.
    w_hi = w.astype(jnp.bfloat16).astype(jnp.float32)
    w_lo = w - w_hi

    def blockdiag_gather(g):
        out = jnp.zeros((2, N_BR, K_PAD, N_BR, E_DIM), jnp.float32)
        for br in range(N_BR):
            out = out.at[:, br, :, br, :].set(g[:, br])
        return out.reshape(2, N_BR * K_PAD, N_BR * E_DIM)

    wghi = blockdiag_gather(w_hi)
    wglo = blockdiag_gather(w_lo)

    # Squared codebook norms; padded entry gets a huge norm so it never wins.
    wn = jnp.sum(w * w, axis=-1)                                      # (2, 3, 8)
    wn = wn.at[:, :, N_E:].set(jnp.float32(1e30))
    wn = wn.reshape(2, 1, N_BR * K_PAD)
    return wneg2t, wn, wghi, wglo


def _choose_tiling(b):
    # >= 2 tiles (so both v7x TensorCores get work), block rows a multiple of 8,
    # minimal batch padding (pad to block_b * nb, not to a MAX_BLOCK_B multiple).
    nb = max(2, _ceil_div(b, MAX_BLOCK_B))
    block_b = _ceil_div(_ceil_div(b, nb), 8) * 8
    return nb, block_b, nb * block_b


@jax.jit
def srvq3_forward(z_mel, z_pitch, z_energy, cls_loss, params):
    """SRVQ3WithNeutralization.forward (forward values only)."""
    b, d = z_mel.shape
    wneg2t, wn, wghi, wglo = _prep_codebooks(params)

    nb, block_b, b_pad = _choose_tiling(b)
    if b_pad > b:
        pad = ((0, b_pad - b), (0, 0))
        zm, zp, ze = (jnp.pad(z_mel, pad), jnp.pad(z_pitch, pad),
                      jnp.pad(z_energy, pad))
    else:
        zm, zp, ze = z_mel, z_pitch, z_energy

    q, idx_packed, loss_part = _srvq3_pallas(
        zm.astype(jnp.float32), zp.astype(jnp.float32), ze.astype(jnp.float32),
        wneg2t, wn, wghi, wglo, b, block_b, nb)

    q = q[:b]                                 # (B, 6*e_dim) = cat([qm, qp, qe], 1)
    packed = idx_packed[:b, 0]
    indices = [((packed // (1 << (4 * j))) % 16).astype(jnp.int32)[:, None]
               for j in range(6)]             # [m1, m2, p1, p2, e1, e2]

    # forward value of the torch loss: sum over the 6 VQ layers of
    # (1 + beta) * mean((z_q - z)^2), each mean over (true B) * e_dim elements.
    commit_loss = (1.0 + BETA) * jnp.sum(loss_part[:, 0, 0]) / jnp.float32(b * d)
    vq_loss = commit_loss + cls_loss

    qm, qp, qe = q[:, 0:2 * d], q[:, 2 * d:4 * d], q[:, 4 * d:6 * d]
    codebooks = [qm, qp, qe, qm + qp + qe]
    return q, vq_loss, indices, codebooks


# ---------- pure-JAX reference (correctness check only) ----------
def _vq_ref(x, w):
    d = jnp.sum(x ** 2, 1, keepdims=True) + jnp.sum(w ** 2, 1) - 2.0 * (x @ w.T)
    idx = jnp.argmin(d, axis=1)
    zq = w[idx]
    loss = (1.0 + BETA) * jnp.mean((zq - x) ** 2)
    return zq, idx, loss


def _rvq_ref(z, w1, w2):
    q1, i1, l1 = _vq_ref(z, w1)
    q2, i2, l2 = _vq_ref(z - q1, w2)
    return jnp.concatenate([q1, q2], 1), l1 + l2, [i1[:, None], i2[:, None]]


def _check(batch, key):
    keys = jax.random.split(key, 10)

    def init_codebook(k):
        # nn.Embedding weight, uniform(-1/n_e, 1/n_e), shape (n_e, e_dim)
        return jax.random.uniform(k, (N_E, E_DIM), jnp.float32,
                                  minval=-1.0 / N_E, maxval=1.0 / N_E)

    params = {
        "RVQ1": (init_codebook(keys[0]), init_codebook(keys[1])),
        "RVQ2": (init_codebook(keys[2]), init_codebook(keys[3])),
        "RVQ3": (init_codebook(keys[4]), init_codebook(keys[5])),
    }
    z_mel = jax.random.normal(keys[6], (batch, E_DIM), jnp.float32)
    z_pitch = jax.random.normal(keys[7], (batch, E_DIM), jnp.float32)
    z_energy = jax.random.normal(keys[8], (batch, E_DIM), jnp.float32)
    cls_loss = jnp.float32(0.1)

    out = srvq3_forward(z_mel, z_pitch, z_energy, cls_loss, params)
    quantized, vq_loss, indices, codebooks = jax.block_until_ready(out)

    refs = [_rvq_ref(z, *params[k])
            for z, k in ((z_mel, "RVQ1"), (z_pitch, "RVQ2"), (z_energy, "RVQ3"))]
    q_ref = jnp.concatenate([r[0] for r in refs], axis=1)
    loss_ref = refs[0][1] + refs[1][1] + refs[2][1] + cls_loss
    idx_ref = [refs[0][2][0], refs[0][2][1],
               refs[1][2][0], refs[1][2][1],
               refs[2][2][0], refs[2][2][1]]

    assert quantized.shape == (batch, 6 * E_DIM)
    assert jnp.allclose(quantized, q_ref, atol=1e-5), "quantized mismatch"
    assert jnp.allclose(vq_loss, loss_ref, atol=1e-4), "vq_loss mismatch"
    for a, r in zip(indices, idx_ref):
        assert a.shape == (batch, 1) and jnp.all(a == r.astype(jnp.int32)), \
            "indices mismatch"
    assert jnp.allclose(codebooks[3],
                        codebooks[0] + codebooks[1] + codebooks[2], atol=1e-6)


if __name__ == "__main__":
    key_small, key_big = jax.random.split(jax.random.PRNGKey(0))
    _check(batch=2, key=key_small)     # tiny batch (two 8-row tiles, masked loss)
    _check(batch=520, key=key_big)     # multi-tile path with minimal padding (528)
    # TODO(synk): training-time state (usage buffer EMA, perplexity tracking,
    # k-means codebook re-init) is module-state mutation, not part of the
    # returned forward values, and is not translated.
    print("KERNEL_OK")
</pallas_src>

<mosaic_0001>
module attributes {stable_mosaic.version = 11 : i64} {
  func.func @srvq_kernel(%arg0: i32, %arg1: memref<8x128xf32, #tpu.memory_space<vmem>>, %arg2: memref<8x128xf32, #tpu.memory_space<vmem>>, %arg3: memref<8x128xf32, #tpu.memory_space<vmem>>, %arg4: memref<2x384x24xf32, #tpu.memory_space<vmem>>, %arg5: memref<2x1x24xf32, #tpu.memory_space<vmem>>, %arg6: memref<2x24x384xf32, #tpu.memory_space<vmem>>, %arg7: memref<2x24x384xf32, #tpu.memory_space<vmem>>, %arg8: memref<8x768xf32, #tpu.memory_space<vmem>>, %arg9: memref<8x1xi32, #tpu.memory_space<vmem>>, %arg10: memref<1x1x128xf32, #tpu.memory_space<vmem>>) attributes {dimension_semantics = [#tpu.dimension_semantics<parallel>], iteration_bounds = array<i64: 2>, scalar_prefetch = 0 : i64, scratch_operands = 0 : i64, tpu.core_type = #tpu.core_type<tc>, window_params = [{transform_indices = @transform_0, window_bounds = array<i64: 8, 128>}, {transform_indices = @transform_1, window_bounds = array<i64: 8, 128>}, {transform_indices = @transform_2, window_bounds = array<i64: 8, 128>}, {pipeline_mode = #tpu.pipeline_mode<synchronous>, transform_indices = @transform_3, window_bounds = array<i64: 2, 384, 24>}, {pipeline_mode = #tpu.pipeline_mode<synchronous>, transform_indices = @transform_4, window_bounds = array<i64: 2, 1, 24>}, {pipeline_mode = #tpu.pipeline_mode<synchronous>, transform_indices = @transform_5, window_bounds = array<i64: 2, 24, 384>}, {pipeline_mode = #tpu.pipeline_mode<synchronous>, transform_indices = @transform_6, window_bounds = array<i64: 2, 24, 384>}, {transform_indices = @transform_7, window_bounds = array<i64: 8, 768>}, {transform_indices = @transform_8, window_bounds = array<i64: 8, 1>}, {transform_indices = @transform_9, window_bounds = array<i64: 1, 1, 128>}]} {
    %c0 = arith.constant 0 : index
    %c0_0 = arith.constant 0 : index
    %0 = vector.load %arg1[%c0, %c0_0] : memref<8x128xf32, #tpu.memory_space<vmem>>, vector<8x128xf32>
    %c0_1 = arith.constant 0 : index
    %c0_2 = arith.constant 0 : index
    %1 = vector.load %arg2[%c0_1, %c0_2] : memref<8x128xf32, #tpu.memory_space<vmem>>, vector<8x128xf32>
    %c0_3 = arith.constant 0 : index
    %c0_4 = arith.constant 0 : index
    %2 = vector.load %arg3[%c0_3, %c0_4] : memref<8x128xf32, #tpu.memory_space<vmem>>, vector<8x128xf32>
    %3 = tpu.concatenate %0, %1, %2 in 1 : vector<8x128xf32>, vector<8x128xf32>, vector<8x128xf32> -> vector<8x384xf32>
    %c0_5 = arith.constant 0 : index
    %c0_6 = arith.constant 0 : index
    %c0_7 = arith.constant 0 : index
    %4 = vector.load %arg5[%c0_5, %c0_6, %c0_7] : memref<2x1x24xf32, #tpu.memory_space<vmem>>, vector<1x1x24xf32>
    %5 = vector.shape_cast %4 : vector<1x1x24xf32> to vector<1x24xf32>
    %c0_8 = arith.constant 0 : index
    %c0_9 = arith.constant 0 : index
    %c0_10 = arith.constant 0 : index
    %6 = vector.load %arg4[%c0_8, %c0_9, %c0_10] : memref<2x384x24xf32, #tpu.memory_space<vmem>>, vector<1x384x24xf32>
    %7 = vector.shape_cast %6 : vector<1x384x24xf32> to vector<384x24xf32>
    %cst = arith.constant dense<0.000000e+00> : vector<8x24xf32>
    %8 = tpu.matmul %3, %7, %cst {dimension_numbers = #tpu.dot_dimension_numbers<[1], [0], [0], [1], [0, 0, 1, 1], [], []>} : vector<8x384xf32>, vector<384x24xf32>, vector<8x24xf32> -> vector<8x24xf32>
    %9 = vector.broadcast %5 : vector<1x24xf32> to vector<8x24xf32>
    %10 = arith.addf %9, %8 : vector<8x24xf32>
    %11 = vector.extract_strided_slice %10 {offsets = [0, 0], sizes = [8, 8], strides = [1, 1]} : vector<8x24xf32> to vector<8x8xf32>
    %cst_11 = arith.constant dense<0x7F800000> : vector<8xf32>
    %12 = vector.multi_reduction <minimumf>, %11, %cst_11 [1] : vector<8x8xf32> to vector<8xf32>
    %13 = vector.shape_cast %12 : vector<8xf32> to vector<8x1xf32>
    %14 = tpu.iota {dimensions = array<i32: 1>} : vector<8x8xi32>
    %15 = vector.broadcast %13 : vector<8x1xf32> to vector<8x8xf32>
    %16 = arith.cmpf ole, %11, %15 : vector<8x8xf32>
    %c8_i32 = arith.constant 8 : i32
    %17 = vector.broadcast %c8_i32 : i32 to vector<8x8xi32>
    %18 = arith.select %16, %14, %17 : vector<8x8xi1>, vector<8x8xi32>
    %cst_12 = arith.constant dense<2147483647> : vector<8xi32>
    %19 = vector.multi_reduction <minsi>, %18, %cst_12 [1] : vector<8x8xi32> to vector<8xi32>
    %20 = vector.shape_cast %19 : vector<8xi32> to vector<8x1xi32>
    %21 = vector.extract_strided_slice %10 {offsets = [0, 8], sizes = [8, 8], strides = [1, 1]} : vector<8x24xf32> to vector<8x8xf32>
    %cst_13 = arith.constant dense<0x7F800000> : vector<8xf32>
    %22 = vector.multi_reduction <minimumf>, %21, %cst_13 [1] : vector<8x8xf32> to vector<8xf32>
    %23 = vector.shape_cast %22 : vector<8xf32> to vector<8x1xf32>
    %24 = tpu.iota {dimensions = array<i32: 1>} : vector<8x8xi32>
    %25 = vector.broadcast %23 : vector<8x1xf32> to vector<8x8xf32>
    %26 = arith.cmpf ole, %21, %25 : vector<8x8xf32>
    %c8_i32_14 = arith.constant 8 : i32
    %27 = vector.broadcast %c8_i32_14 : i32 to vector<8x8xi32>
    %28 = arith.select %26, %24, %27 : vector<8x8xi1>, vector<8x8xi32>
    %cst_15 = arith.constant dense<2147483647> : vector<8xi32>
    %29 = vector.multi_reduction <minsi>, %28, %cst_15 [1] : vector<8x8xi32> to vector<8xi32>
    %30 = vector.shape_cast %29 : vector<8xi32> to vector<8x1xi32>
    %31 = vector.extract_strided_slice %10 {offsets = [0, 16], sizes = [8, 8], strides = [1, 1]} : vector<8x24xf32> to vector<8x8xf32>
    %cst_16 = arith.constant dense<0x7F800000> : vector<8xf32>
    %32 = vector.multi_reduction <minimumf>, %31, %cst_16 [1] : vector<8x8xf32> to vector<8xf32>
    %33 = vector.shape_cast %32 : vector<8xf32> to vector<8x1xf32>
    %34 = tpu.iota {dimensions = array<i32: 1>} : vector<8x8xi32>
    %35 = vector.broadcast %33 : vector<8x1xf32> to vector<8x8xf32>
    %36 = arith.cmpf ole, %31, %35 : vector<8x8xf32>
    %c8_i32_17 = arith.constant 8 : i32
    %37 = vector.broadcast %c8_i32_17 : i32 to vector<8x8xi32>
    %38 = arith.select %36, %34, %37 : vector<8x8xi1>, vector<8x8xi32>
    %cst_18 = arith.constant dense<2147483647> : vector<8xi32>
    %39 = vector.multi_reduction <minsi>, %38, %cst_18 [1] : vector<8x8xi32> to vector<8xi32>
    %40 = vector.shape_cast %39 : vector<8xi32> to vector<8x1xi32>
    %41 = tpu.iota {dimensions = array<i32: 1>} : vector<8x24xi32>
    %42 = vector.broadcast %20 : vector<8x1xi32> to vector<8x24xi32>
    %43 = arith.cmpi eq, %41, %42 : vector<8x24xi32>
    %c8_i32_19 = arith.constant 8 : i32
    %44 = vector.broadcast %c8_i32_19 : i32 to vector<8x1xi32>
    %45 = arith.addi %30, %44 : vector<8x1xi32>
    %46 = vector.broadcast %45 : vector<8x1xi32> to vector<8x24xi32>
    %47 = arith.cmpi eq, %41, %46 : vector<8x24xi32>
    %48 = arith.ori %43, %47 : vector<8x24xi1>
    %c16_i32 = arith.constant 16 : i32
    %49 = vector.broadcast %c16_i32 : i32 to vector<8x1xi32>
    %50 = arith.addi %40, %49 : vector<8x1xi32>
    %51 = vector.broadcast %50 : vector<8x1xi32> to vector<8x24xi32>
    %52 = arith.cmpi eq, %41, %51 : vector<8x24xi32>
    %53 = arith.ori %48, %52 : vector<8x24xi1>
    %54 = arith.extui %53 : vector<8x24xi1> to vector<8x24xi32>
    %55 = arith.sitofp %54 : vector<8x24xi32> to vector<8x24xf32>
    %c0_20 = arith.constant 0 : index
    %c0_21 = arith.constant 0 : index
    %c0_22 = arith.constant 0 : index
    %56 = vector.load %arg6[%c0_20, %c0_21, %c0_22] : memref<2x24x384xf32, #tpu.memory_space<vmem>>, vector<1x24x384xf32>
    %57 = vector.shape_cast %56 : vector<1x24x384xf32> to vector<24x384xf32>
    %cst_23 = arith.constant dense<0.000000e+00> : vector<8x384xf32>
    %58 = tpu.matmul %55, %57, %cst_23 {dimension_numbers = #tpu.dot_dimension_numbers<[1], [0], [0], [1], [0, 0, 1, 1], [], []>} : vector<8x24xf32>, vector<24x384xf32>, vector<8x384xf32> -> vector<8x384xf32>
    %c0_24 = arith.constant 0 : index
    %c0_25 = arith.constant 0 : index
    %c0_26 = arith.constant 0 : index
    %59 = vector.load %arg7[%c0_24, %c0_25, %c0_26] : memref<2x24x384xf32, #tpu.memory_space<vmem>>, vector<1x24x384xf32>
    %60 = vector.shape_cast %59 : vector<1x24x384xf32> to vector<24x384xf32>
    %cst_27 = arith.constant dense<0.000000e+00> : vector<8x384xf32>
    %61 = tpu.matmul %55, %60, %cst_27 {dimension_numbers = #tpu.dot_dimension_numbers<[1], [0], [0], [1], [0, 0, 1, 1], [], []>} : vector<8x24xf32>, vector<24x384xf32>, vector<8x384xf32> -> vector<8x384xf32>
    %62 = arith.addf %58, %61 : vector<8x384xf32>
    %63 = arith.subf %3, %62 : vector<8x384xf32>
    %c1 = arith.constant 1 : index
    %c0_28 = arith.constant 0 : index
    %c0_29 = arith.constant 0 : index
    %64 = vector.load %arg5[%c1, %c0_28, %c0_29] : memref<2x1x24xf32, #tpu.memory_space<vmem>>, vector<1x1x24xf32>
    %65 = vector.shape_cast %64 : vector<1x1x24xf32> to vector<1x24xf32>
    %c1_30 = arith.constant 1 : index
    %c0_31 = arith.constant 0 : index
    %c0_32 = arith.constant 0 : index
    %66 = vector.load %arg4[%c1_30, %c0_31, %c0_32] : memref<2x384x24xf32, #tpu.memory_space<vmem>>, vector<1x384x24xf32>
    %67 = vector.shape_cast %66 : vector<1x384x24xf32> to vector<384x24xf32>
    %cst_33 = arith.constant dense<0.000000e+00> : vector<8x24xf32>
    %68 = tpu.matmul %63, %67, %cst_33 {dimension_numbers = #tpu.dot_dimension_numbers<[1], [0], [0], [1], [0, 0, 1, 1], [], []>} : vector<8x384xf32>, vector<384x24xf32>, vector<8x24xf32> -> vector<8x24xf32>
    %69 = vector.broadcast %65 : vector<1x24xf32> to vector<8x24xf32>
    %70 = arith.addf %69, %68 : vector<8x24xf32>
    %71 = vector.extract_strided_slice %70 {offsets = [0, 0], sizes = [8, 8], strides = [1, 1]} : vector<8x24xf32> to vector<8x8xf32>
    %cst_34 = arith.constant dense<0x7F800000> : vector<8xf32>
    %72 = vector.multi_reduction <minimumf>, %71, %cst_34 [1] : vector<8x8xf32> to vector<8xf32>
    %73 = vector.shape_cast %72 : vector<8xf32> to vector<8x1xf32>
    %74 = tpu.iota {dimensions = array<i32: 1>} : vector<8x8xi32>
    %75 = vector.broadcast %73 : vector<8x1xf32> to vector<8x8xf32>
    %76 = arith.cmpf ole, %71, %75 : vector<8x8xf32>
    %c8_i32_35 = arith.constant 8 : i32
    %77 = vector.broadcast %c8_i32_35 : i32 to vector<8x8xi32>
    %78 = arith.select %76, %74, %77 : vector<8x8xi1>, vector<8x8xi32>
    %cst_36 = arith.constant dense<2147483647> : vector<8xi32>
    %79 = vector.multi_reduction <minsi>, %78, %cst_36 [1] : vector<8x8xi32> to vector<8xi32>
    %80 = vector.shape_cast %79 : vector<8xi32> to vector<8x1xi32>
    %81 = vector.extract_strided_slice %70 {offsets = [0, 8], sizes = [8, 8], strides = [1, 1]} : vector<8x24xf32> to vector<8x8xf32>
    %cst_37 = arith.constant dense<0x7F800000> : vector<8xf32>
    %82 = vector.multi_reduction <minimumf>, %81, %cst_37 [1] : vector<8x8xf32> to vector<8xf32>
    %83 = vector.shape_cast %82 : vector<8xf32> to vector<8x1xf32>
    %84 = tpu.iota {dimensions = array<i32: 1>} : vector<8x8xi32>
    %85 = vector.broadcast %83 : vector<8x1xf32> to vector<8x8xf32>
    %86 = arith.cmpf ole, %81, %85 : vector<8x8xf32>
    %c8_i32_38 = arith.constant 8 : i32
    %87 = vector.broadcast %c8_i32_38 : i32 to vector<8x8xi32>
    %88 = arith.select %86, %84, %87 : vector<8x8xi1>, vector<8x8xi32>
    %cst_39 = arith.constant dense<2147483647> : vector<8xi32>
    %89 = vector.multi_reduction <minsi>, %88, %cst_39 [1] : vector<8x8xi32> to vector<8xi32>
    %90 = vector.shape_cast %89 : vector<8xi32> to vector<8x1xi32>
    %91 = vector.extract_strided_slice %70 {offsets = [0, 16], sizes = [8, 8], strides = [1, 1]} : vector<8x24xf32> to vector<8x8xf32>
    %cst_40 = arith.constant dense<0x7F800000> : vector<8xf32>
    %92 = vector.multi_reduction <minimumf>, %91, %cst_40 [1] : vector<8x8xf32> to vector<8xf32>
    %93 = vector.shape_cast %92 : vector<8xf32> to vector<8x1xf32>
    %94 = tpu.iota {dimensions = array<i32: 1>} : vector<8x8xi32>
    %95 = vector.broadcast %93 : vector<8x1xf32> to vector<8x8xf32>
    %96 = arith.cmpf ole, %91, %95 : vector<8x8xf32>
    %c8_i32_41 = arith.constant 8 : i32
    %97 = vector.broadcast %c8_i32_41 : i32 to vector<8x8xi32>
    %98 = arith.select %96, %94, %97 : vector<8x8xi1>, vector<8x8xi32>
    %cst_42 = arith.constant dense<2147483647> : vector<8xi32>
    %99 = vector.multi_reduction <minsi>, %98, %cst_42 [1] : vector<8x8xi32> to vector<8xi32>
    %100 = vector.shape_cast %99 : vector<8xi32> to vector<8x1xi32>
    %101 = tpu.iota {dimensions = array<i32: 1>} : vector<8x24xi32>
    %102 = vector.broadcast %80 : vector<8x1xi32> to vector<8x24xi32>
    %103 = arith.cmpi eq, %101, %102 : vector<8x24xi32>
    %c8_i32_43 = arith.constant 8 : i32
    %104 = vector.broadcast %c8_i32_43 : i32 to vector<8x1xi32>
    %105 = arith.addi %90, %104 : vector<8x1xi32>
    %106 = vector.broadcast %105 : vector<8x1xi32> to vector<8x24xi32>
    %107 = arith.cmpi eq, %101, %106 : vector<8x24xi32>
    %108 = arith.ori %103, %107 : vector<8x24xi1>
    %c16_i32_44 = arith.constant 16 : i32
    %109 = vector.broadcast %c16_i32_44 : i32 to vector<8x1xi32>
    %110 = arith.addi %100, %109 : vector<8x1xi32>
    %111 = vector.broadcast %110 : vector<8x1xi32> to vector<8x24xi32>
    %112 = arith.cmpi eq, %101, %111 : vector<8x24xi32>
    %113 = arith.ori %108, %112 : vector<8x24xi1>
    %114 = arith.extui %113 : vector<8x24xi1> to vector<8x24xi32>
    %115 = arith.sitofp %114 : vector<8x24xi32> to vector<8x24xf32>
    %c1_45 = arith.constant 1 : index
    %c0_46 = arith.constant 0 : index
    %c0_47 = arith.constant 0 : index
    %116 = vector.load %arg6[%c1_45, %c0_46, %c0_47] : memref<2x24x384xf32, #tpu.memory_space<vmem>>, vector<1x24x384xf32>
    %117 = vector.shape_cast %116 : vector<1x24x384xf32> to vector<24x384xf32>
    %cst_48 = arith.constant dense<0.000000e+00> : vector<8x384xf32>
    %118 = tpu.matmul %115, %117, %cst_48 {dimension_numbers = #tpu.dot_dimension_numbers<[1], [0], [0], [1], [0, 0, 1, 1], [], []>} : vector<8x24xf32>, vector<24x384xf32>, vector<8x384xf32> -> vector<8x384xf32>
    %c1_49 = arith.constant 1 : index
    %c0_50 = arith.constant 0 : index
    %c0_51 = arith.constant 0 : index
    %119 = vector.load %arg7[%c1_49, %c0_50, %c0_51] : memref<2x24x384xf32, #tpu.memory_space<vmem>>, vector<1x24x384xf32>
    %120 = vector.shape_cast %119 : vector<1x24x384xf32> to vector<24x384xf32>
    %cst_52 = arith.constant dense<0.000000e+00> : vector<8x384xf32>
    %121 = tpu.matmul %115, %120, %cst_52 {dimension_numbers = #tpu.dot_dimension_numbers<[1], [0], [0], [1], [0, 0, 1, 1], [], []>} : vector<8x24xf32>, vector<24x384xf32>, vector<8x384xf32> -> vector<8x384xf32>
    %122 = arith.addf %118, %121 : vector<8x384xf32>
    %123 = vector.extract_strided_slice %62 {offsets = [0, 0], sizes = [8, 128], strides = [1, 1]} : vector<8x384xf32> to vector<8x128xf32>
    %c0_53 = arith.constant 0 : index
    %c0_54 = arith.constant 0 : index
    %124 = vector.load %arg8[%c0_53, %c0_54] : memref<8x768xf32, #tpu.memory_space<vmem>>, vector<8x128xf32>
    tpu.vector_store %arg8[%c0_53, %c0_54], %123 {strides = array<i32>} : memref<8x768xf32, #tpu.memory_space<vmem>>, vector<8x128xf32>,
    %125 = vector.extract_strided_slice %122 {offsets = [0, 0], sizes = [8, 128], strides = [1, 1]} : vector<8x384xf32> to vector<8x128xf32>
    %c0_55 = arith.constant 0 : index
    %c128 = arith.constant 128 : index
    %126 = vector.load %arg8[%c0_55, %c128] : memref<8x768xf32, #tpu.memory_space<vmem>>, vector<8x128xf32>
    tpu.vector_store %arg8[%c0_55, %c128], %125 {strides = array<i32>} : memref<8x768xf32, #tpu.memory_space<vmem>>, vector<8x128xf32>,
    %127 = vector.extract_strided_slice %62 {offsets = [0, 128], sizes = [8, 128], strides = [1, 1]} : vector<8x384xf32> to vector<8x128xf32>
    %c0_56 = arith.constant 0 : index
    %c256 = arith.constant 256 : index
    %128 = vector.load %arg8[%c0_56, %c256] : memref<8x768xf32, #tpu.memory_space<vmem>>, vector<8x128xf32>
    tpu.vector_store %arg8[%c0_56, %c256], %127 {strides = array<i32>} : memref<8x768xf32, #tpu.memory_space<vmem>>, vector<8x128xf32>,
    %129 = vector.extract_strided_slice %122 {offsets = [0, 128], sizes = [8, 128], strides = [1, 1]} : vector<8x384xf32> to vector<8x128xf32>
    %c0_57 = arith.constant 0 : index
    %c384 = arith.constant 384 : index
    %130 = vector.load %arg8[%c0_57, %c384] : memref<8x768xf32, #tpu.memory_space<vmem>>, vector<8x128xf32>
    tpu.vector_store %arg8[%c0_57, %c384], %129 {strides = array<i32>} : memref<8x768xf32, #tpu.memory_space<vmem>>, vector<8x128xf32>,
    %131 = vector.extract_strided_slice %62 {offsets = [0, 256], sizes = [8, 128], strides = [1, 1]} : vector<8x384xf32> to vector<8x128xf32>
    %c0_58 = arith.constant 0 : index
    %c512 = arith.constant 512 : index
    %132 = vector.load %arg8[%c0_58, %c512] : memref<8x768xf32, #tpu.memory_space<vmem>>, vector<8x128xf32>
    tpu.vector_store %arg8[%c0_58, %c512], %131 {strides = array<i32>} : memref<8x768xf32, #tpu.memory_space<vmem>>, vector<8x128xf32>,
    %133 = vector.extract_strided_slice %122 {offsets = [0, 256], sizes = [8, 128], strides = [1, 1]} : vector<8x384xf32> to vector<8x128xf32>
    %c0_59 = arith.constant 0 : index
    %c640 = arith.constant 640 : index
    %134 = vector.load %arg8[%c0_59, %c640] : memref<8x768xf32, #tpu.memory_space<vmem>>, vector<8x128xf32>
    tpu.vector_store %arg8[%c0_59, %c640], %133 {strides = array<i32>} : memref<8x768xf32, #tpu.memory_space<vmem>>, vector<8x128xf32>,
    %c0_i32 = arith.constant 0 : i32
    %135 = vector.broadcast %c0_i32 : i32 to vector<8x1xi32>
    %c1_i32 = arith.constant 1 : i32
    %136 = vector.broadcast %c1_i32 : i32 to vector<8x1xi32>
    %137 = arith.muli %20, %136 : vector<8x1xi32>
    %138 = arith.addi %135, %137 : vector<8x1xi32>
    %c16_i32_60 = arith.constant 16 : i32
    %139 = vector.broadcast %c16_i32_60 : i32 to vector<8x1xi32>
    %140 = arith.muli %80, %139 : vector<8x1xi32>
    %141 = arith.addi %138, %140 : vector<8x1xi32>
    %c256_i32 = arith.constant 256 : i32
    %142 = vector.broadcast %c256_i32 : i32 to vector<8x1xi32>
    %143 = arith.muli %30, %142 : vector<8x1xi32>
    %144 = arith.addi %141, %143 : vector<8x1xi32>
    %c4096_i32 = arith.constant 4096 : i32
    %145 = vector.broadcast %c4096_i32 : i32 to vector<8x1xi32>
    %146 = arith.muli %90, %145 : vector<8x1xi32>
    %147 = arith.addi %144, %146 : vector<8x1xi32>
    %c65536_i32 = arith.constant 65536 : i32
    %148 = vector.broadcast %c65536_i32 : i32 to vector<8x1xi32>
    %149 = arith.muli %40, %148 : vector<8x1xi32>
    %150 = arith.addi %147, %149 : vector<8x1xi32>
    %c1048576_i32 = arith.constant 1048576 : i32
    %151 = vector.broadcast %c1048576_i32 : i32 to vector<8x1xi32>
    %152 = arith.muli %100, %151 : vector<8x1xi32>
    %153 = arith.addi %150, %152 : vector<8x1xi32>
    %c0_61 = arith.constant 0 : index
    %c0_62 = arith.constant 0 : index
    %154 = vector.load %arg9[%c0_61, %c0_62] : memref<8x1xi32, #tpu.memory_space<vmem>>, vector<8x1xi32>
    tpu.vector_store %arg9[%c0_61, %c0_62], %153 {strides = array<i32>} : memref<8x1xi32, #tpu.memory_space<vmem>>, vector<8x1xi32>,
    %c8_i32_63 = arith.constant 8 : i32
    %155 = arith.muli %arg0, %c8_i32_63 : i32
    %156 = tpu.iota {dimensions = array<i32: 0>} : vector<8x1xi32>
    %157 = vector.broadcast %155 : i32 to vector<8x1xi32>
    %158 = arith.addi %157, %156 : vector<8x1xi32>
    %c2_i32 = arith.constant 2 : i32
    %159 = vector.broadcast %c2_i32 : i32 to vector<8x1xi32>
    %160 = arith.cmpi slt, %158, %159 : vector<8x1xi32>
    %161 = arith.extui %160 : vector<8x1xi1> to vector<8x1xi32>
    %162 = arith.sitofp %161 : vector<8x1xi32> to vector<8x1xf32>
    %163 = arith.mulf %63, %63 : vector<8x384xf32>
    %cst_64 = arith.constant dense<0.000000e+00> : vector<8xf32>
    %164 = vector.multi_reduction <add>, %163, %cst_64 [1] : vector<8x384xf32> to vector<8xf32>
    %165 = vector.shape_cast %164 : vector<8xf32> to vector<8x1xf32>
    %166 = arith.subf %122, %63 : vector<8x384xf32>
    %167 = arith.mulf %166, %166 : vector<8x384xf32>
    %cst_65 = arith.constant dense<0.000000e+00> : vector<8xf32>
    %168 = vector.multi_reduction <add>, %167, %cst_65 [1] : vector<8x384xf32> to vector<8xf32>
    %169 = vector.shape_cast %168 : vector<8xf32> to vector<8x1xf32>
    %170 = arith.addf %165, %169 : vector<8x1xf32>
    %171 = arith.mulf %162, %170 : vector<8x1xf32>
    %172 = vector.shape_cast %171 : vector<8x1xf32> to vector<1x8x1xf32>
    %cst_66 = arith.constant dense<0.000000e+00> : vector<1xf32>
    %173 = vector.multi_reduction <add>, %172, %cst_66 [1, 2] : vector<1x8x1xf32> to vector<1xf32>
    %174 = vector.shape_cast %173 : vector<1xf32> to vector<1x1x1xf32>
    %175 = vector.extract %174[0, 0, 0] : f32 from vector<1x1x1xf32>
    %176 = vector.broadcast %175 : f32 to vector<1x1x128xf32>
    %c0_67 = arith.constant 0 : index
    %c0_68 = arith.constant 0 : index
    %c0_69 = arith.constant 0 : index
    %177 = vector.load %arg10[%c0_67, %c0_68, %c0_69] : memref<1x1x128xf32, #tpu.memory_space<vmem>>, vector<1x1x128xf32>
    tpu.vector_store %arg10[%c0_67, %c0_68, %c0_69], %176 {strides = array<i32>} : memref<1x1x128xf32, #tpu.memory_space<vmem>>, vector<1x1x128xf32>,
    return
  }
  func.func @transform_0(%arg0: i32) -> (i32, i32) {
    %c0_i32 = arith.constant 0 : i32
    %c0_i32_0 = arith.constant 0 : i32
    return %arg0, %c0_i32 : i32, i32
  }
  func.func @transform_1(%arg0: i32) -> (i32, i32) {
    %c0_i32 = arith.constant 0 : i32
    %c0_i32_0 = arith.constant 0 : i32
    return %arg0, %c0_i32 : i32, i32
  }
  func.func @transform_2(%arg0: i32) -> (i32, i32) {
    %c0_i32 = arith.constant 0 : i32
    %c0_i32_0 = arith.constant 0 : i32
    return %arg0, %c0_i32 : i32, i32
  }
  func.func @transform_3(%arg0: i32) -> (i32, i32, i32) {
    %c0_i32 = arith.constant 0 : i32
    %c0_i32_0 = arith.constant 0 : i32
    %c0_i32_1 = arith.constant 0 : i32
    %c0_i32_2 = arith.constant 0 : i32
    return %c0_i32, %c0_i32_0, %c0_i32_1 : i32, i32, i32
  }
  func.func @transform_4(%arg0: i32) -> (i32, i32, i32) {
    %c0_i32 = arith.constant 0 : i32
    %c0_i32_0 = arith.constant 0 : i32
    %c0_i32_1 = arith.constant 0 : i32
    %c0_i32_2 = arith.constant 0 : i32
    return %c0_i32, %c0_i32_0, %c0_i32_1 : i32, i32, i32
  }
  func.func @transform_5(%arg0: i32) -> (i32, i32, i32) {
    %c0_i32 = arith.constant 0 : i32
    %c0_i32_0 = arith.constant 0 : i32
    %c0_i32_1 = arith.constant 0 : i32
    %c0_i32_2 = arith.constant 0 : i32
    return %c0_i32, %c0_i32_0, %c0_i32_1 : i32, i32, i32
  }
  func.func @transform_6(%arg0: i32) -> (i32, i32, i32) {
    %c0_i32 = arith.constant 0 : i32
    %c0_i32_0 = arith.constant 0 : i32
    %c0_i32_1 = arith.constant 0 : i32
    %c0_i32_2 = arith.constant 0 : i32
    return %c0_i32, %c0_i32_0, %c0_i32_1 : i32, i32, i32
  }
  func.func @transform_7(%arg0: i32) -> (i32, i32) {
    %c0_i32 = arith.constant 0 : i32
    %c0_i32_0 = arith.constant 0 : i32
    return %arg0, %c0_i32 : i32, i32
  }
  func.func @transform_8(%arg0: i32) -> (i32, i32) {
    %c0_i32 = arith.constant 0 : i32
    %c0_i32_0 = arith.constant 0 : i32
    return %arg0, %c0_i32 : i32, i32
  }
  func.func @transform_9(%arg0: i32) -> (i32, i32, i32) {
    %c0_i32 = arith.constant 0 : i32
    %c0_i32_0 = arith.constant 0 : i32
    %c0_i32_1 = arith.constant 0 : i32
    return %arg0, %c0_i32, %c0_i32_0 : i32, i32, i32
  }
}

</mosaic_0001>

<llo_original>
// kernel: srvq3_forward.1
$region0: #{srvq3_forward.1}
  #allocation0 [shape = 'u32[]', space=smem, size = 0x4, offset = 0x4, fixed_abs, tag = 'smem constant byte address 0x4 - core index']
  #allocation1 [shape = 'u32[144,128]{1,0:T(1,128)}', space=vmem, size = 0x12000, scoped, tag = 'internal scratch']
  %s0 = inlined_call_operand.vmem [shape: f32[16,128], index: 0, kind: input, shape index: {}]
  %s1 = inlined_call_operand.vmem [shape: f32[16,128], index: 1, kind: input, shape index: {}]
  %s2 = inlined_call_operand.vmem [shape: f32[16,128], index: 2, kind: input, shape index: {}]
  %s3 = inlined_call_operand.vmem [shape: f32[2,384,24], index: 3, kind: input, shape index: {}]
  %s4 = inlined_call_operand.vmem [shape: f32[2,1,24], index: 4, kind: input, shape index: {}]
  %s5 = inlined_call_operand.vmem [shape: f32[2,24,384], index: 5, kind: input, shape index: {}]
  %s6 = inlined_call_operand.vmem [shape: f32[2,24,384], index: 6, kind: input, shape index: {}]
  %s7 = inlined_call_operand.vmem [shape: f32[16,768], index: 7, kind: output, shape index: {0}]
  %s8 = inlined_call_operand.vmem [shape: s32[16,1], index: 8, kind: output, shape index: {1}]
  %s9 = inlined_call_operand.vmem [shape: f32[2,1,128], index: 9, kind: output, shape index: {2}]
  %10 = xla_tuple %s7, %s8, %s9
  %s11 = sld [smem:[#allocation0]]
  $region77: #{srvq3_forward.1} parent=0
    _
  %s13 = ssub.s32 1, %s11
  %s14 = scalar_select 0, %s13, %s11
  loop: start=0, step=1, limit=4
  $region2: #{srvq3_forward.1} parent=0 // loop_pre_header
    _
  $region3: #{srvq3_forward.1} parent=0 // loop_header
    %s16 = sphi 0, %s20
    %p17 = scmp.ge.s32.totalorder %s16, 4
    %s26 = sphi 0, %s28
    %s29 = sphi 0, %s26
    %s30 = sphi 0, %s29
    %s46 = sphi 0, %s30
    %s52 = sphi 0, %s54
    %s55 = sphi 0, %s52
    %s56 = sphi 0, %s55
    %s72 = sphi 0, %s56
    %s78 = sphi 0, %s80
    %s81 = sphi 0, %s78
    %s82 = sphi 0, %s81
    %s98 = sphi 0, %s82
    %s102 = sphi 0, %s102
    %s104 = sphi 0, %s102
    %s105 = sphi 0, %s104
    %s119 = sphi 0, %s105
    %s123 = sphi 0, %s123
    %s125 = sphi 0, %s123
    %s126 = sphi 0, %s125
    %s140 = sphi 0, %s126
    %s144 = sphi 0, %s144
    %s146 = sphi 0, %s144
    %s147 = sphi 0, %s146
    %s161 = sphi 0, %s147
    %s165 = sphi 0, %s165
    %s167 = sphi 0, %s165
    %s168 = sphi 0, %s167
    %s182 = sphi 0, %s168
    %s188 = sphi 0, %s190
    %s191 = sphi 0, %s188
    %s192 = sphi 0, %s191
    %s208 = sphi 0, %s192
    %s214 = sphi 0, %s216
    %s217 = sphi 0, %s214
    %s218 = sphi 0, %s217
    %s234 = sphi 0, %s218
    %s240 = sphi 0, %s242
    %s243 = sphi 0, %s240
    %s244 = sphi 0, %s243
    %s260 = sphi 0, %s244
  $region4: #{srvq3_forward.1} parent=0 // loop_header_branch
    %19 = sbr.rel (%p17) target = $region8
  $region5: #{srvq3_forward.1} parent=0 // loop_body
    %s21 = ssub.s32 %s16, 1
    %s22 = ssub.s32 %s16, 2
    %s23 = sadd.s32 %s16, 1
    %s24 = ssub.s32 %s16, %s23
    %p25 = scmp.eq.s32.totalorder %s24, 0
    %s27 = sadd.s32 %s26, 1
    %s28 = scalar_select %p25, %s26, %s27
    %p31 = pneg %p25
    %p32 = scmp.eq.s32.totalorder %s16, 1
    %p33 = por %p31, %p32
    %p34 = scmp.ne.s32.totalorder %s26, %s29
    %p35 = scmp.eq.s32.totalorder %s16, 0
    %p36 = por %p34, %p35
    %p37 = scmp.ne.s32.totalorder %s26, %s29
    %p38 = scmp.eq.s32.totalorder %s21, 1
    %p39 = por %p37, %p38
    %p40 = scmp.ne.s32.totalorder %s29, %s30
    %p41 = scmp.eq.s32.totalorder %s21, 0
    %p42 = por %p40, %p41
    %p43 = scmp.ne.s32.totalorder %s29, %s30
    %p44 = scmp.eq.s32.totalorder %s22, 1
    %p45 = por %p43, %p44
    %p47 = scmp.ne.s32.totalorder %s30, %s46
    %p48 = scmp.eq.s32.totalorder %s22, 0
    %p49 = por %p47, %p48
    %s50 = ssub.s32 %s16, %s23
    %p51 = scmp.eq.s32.totalorder %s50, 0
    %s53 = sadd.s32 %s52, 1
    %s54 = scalar_select %p51, %s52, %s53
    %p57 = pneg %p51
    %p58 = scmp.eq.s32.totalorder %s16, 1
    %p59 = por %p57, %p58
    %p60 = scmp.ne.s32.totalorder %s52, %s55
    %p61 = scmp.eq.s32.totalorder %s16, 0
    %p62 = por %p60, %p61
    %p63 = scmp.ne.s32.totalorder %s52, %s55
    %p64 = scmp.eq.s32.totalorder %s21, 1
    %p65 = por %p63, %p64
    %p66 = scmp.ne.s32.totalorder %s55, %s56
    %p67 = scmp.eq.s32.totalorder %s21, 0
    %p68 = por %p66, %p67
    %p69 = scmp.ne.s32.totalorder %s55, %s56
    %p70 = scmp.eq.s32.totalorder %s22, 1
    %p71 = por %p69, %p70
    %p73 = scmp.ne.s32.totalorder %s56, %s72
    %p74 = scmp.eq.s32.totalorder %s22, 0
    %p75 = por %p73, %p74
    %s76 = ssub.s32 %s16, %s23
    %p77 = scmp.eq.s32.totalorder %s76, 0
    %s79 = sadd.s32 %s78, 1
    %s80 = scalar_select %p77, %s78, %s79
    %p83 = pneg %p77
    %p84 = scmp.eq.s32.totalorder %s16, 1
    %p85 = por %p83, %p84
    %p86 = scmp.ne.s32.totalorder %s78, %s81
    %p87 = scmp.eq.s32.totalorder %s16, 0
    %p88 = por %p86, %p87
    %p89 = scmp.ne.s32.totalorder %s78, %s81
    %p90 = scmp.eq.s32.totalorder %s21, 1
    %p91 = por %p89, %p90
    %p92 = scmp.ne.s32.totalorder %s81, %s82
    %p93 = scmp.eq.s32.totalorder %s21, 0
    %p94 = por %p92, %p93
    %p95 = scmp.ne.s32.totalorder %s81, %s82
    %p96 = scmp.eq.s32.totalorder %s22, 1
    %p97 = por %p95, %p96
    %p99 = scmp.ne.s32.totalorder %s82, %s98
    %p100 = scmp.eq.s32.totalorder %s22, 0
    %p101 = por %p99, %p100
    %s103 = sadd.s32 %s102, 1
    %p106 = scmp.eq.s32.totalorder %s16, 1
    %p107 = scmp.ne.s32.totalorder %s102, %s104
    %p108 = scmp.eq.s32.totalorder %s16, 0
    %p109 = por %p107, %p108
    %p110 = scmp.ne.s32.totalorder %s102, %s104
    %p111 = scmp.eq.s32.totalorder %s21, 1
    %p112 = por %p110, %p111
    %p113 = scmp.ne.s32.totalorder %s104, %s105
    %p114 = scmp.eq.s32.totalorder %s21, 0
    %p115 = por %p113, %p114
    %p116 = scmp.ne.s32.totalorder %s104, %s105
    %p117 = scmp.eq.s32.totalorder %s22, 1
    %p118 = por %p116, %p117
    %p120 = scmp.ne.s32.totalorder %s105, %s119
    %p121 = scmp.eq.s32.totalorder %s22, 0
    %p122 = por %p120, %p121
    %s124 = sadd.s32 %s123, 1
    %p127 = scmp.eq.s32.totalorder %s16, 1
    %p128 = scmp.ne.s32.totalorder %s123, %s125
    %p129 = scmp.eq.s32.totalorder %s16, 0
    %p130 = por %p128, %p129
    %p131 = scmp.ne.s32.totalorder %s123, %s125
    %p132 = scmp.eq.s32.totalorder %s21, 1
    %p133 = por %p131, %p132
    %p134 = scmp.ne.s32.totalorder %s125, %s126
    %p135 = scmp.eq.s32.totalorder %s21, 0
    %p136 = por %p134, %p135
    %p137 = scmp.ne.s32.totalorder %s125, %s126
    %p138 = scmp.eq.s32.totalorder %s22, 1
    %p139 = por %p137, %p138
    %p141 = scmp.ne.s32.totalorder %s126, %s140
    %p142 = scmp.eq.s32.totalorder %s22, 0
    %p143 = por %p141, %p142
    %s145 = sadd.s32 %s144, 1
    %p148 = scmp.eq.s32.totalorder %s16, 1
    %p149 = scmp.ne.s32.totalorder %s144, %s146
    %p150 = scmp.eq.s32.totalorder %s16, 0
    %p151 = por %p149, %p150
    %p152 = scmp.ne.s32.totalorder %s144, %s146
    %p153 = scmp.eq.s32.totalorder %s21, 1
    %p154 = por %p152, %p153
    %p155 = scmp.ne.s32.totalorder %s146, %s147
    %p156 = scmp.eq.s32.totalorder %s21, 0
    %p157 = por %p155, %p156
    %p158 = scmp.ne.s32.totalorder %s146, %s147
    %p159 = scmp.eq.s32.totalorder %s22, 1
    %p160 = por %p158, %p159
    %p162 = scmp.ne.s32.totalorder %s147, %s161
    %p163 = scmp.eq.s32.totalorder %s22, 0
    %p164 = por %p162, %p163
    %s166 = sadd.s32 %s165, 1
    %p169 = scmp.eq.s32.totalorder %s16, 1
    %p170 = scmp.ne.s32.totalorder %s165, %s167
    %p171 = scmp.eq.s32.totalorder %s16, 0
    %p172 = por %p170, %p171
    %p173 = scmp.ne.s32.totalorder %s165, %s167
    %p174 = scmp.eq.s32.totalorder %s21, 1
    %p175 = por %p173, %p174
    %p176 = scmp.ne.s32.totalorder %s167, %s168
    %p177 = scmp.eq.s32.totalorder %s21, 0
    %p178 = por %p176, %p177
    %p179 = scmp.ne.s32.totalorder %s167, %s168
    %p180 = scmp.eq.s32.totalorder %s22, 1
    %p181 = por %p179, %p180
    %p183 = scmp.ne.s32.totalorder %s168, %s182
    %p184 = scmp.eq.s32.totalorder %s22, 0
    %p185 = por %p183, %p184
    %s186 = ssub.s32 %s16, %s23
    %p187 = scmp.eq.s32.totalorder %s186, 0
    %s189 = sadd.s32 %s188, 1
    %s190 = scalar_select %p187, %s188, %s189
    %p193 = pneg %p187
    %p194 = scmp.eq.s32.totalorder %s16, 1
    %p195 = por %p193, %p194
    %p196 = scmp.ne.s32.totalorder %s188, %s191
    %p197 = scmp.eq.s32.totalorder %s16, 0
    %p198 = por %p196, %p197
    %p199 = scmp.ne.s32.totalorder %s188, %s191
    %p200 = scmp.eq.s32.totalorder %s21, 1
    %p201 = por %p199, %p200
    %p202 = scmp.ne.s32.totalorder %s191, %s192
    %p203 = scmp.eq.s32.totalorder %s21, 0
    %p204 = por %p202, %p203
    %p205 = scmp.ne.s32.totalorder %s191, %s192
    %p206 = scmp.eq.s32.totalorder %s22, 1
    %p207 = por %p205, %p206
    %p209 = scmp.ne.s32.totalorder %s192, %s208
    %p210 = scmp.eq.s32.totalorder %s22, 0
    %p211 = por %p209, %p210
    %s212 = ssub.s32 %s16, %s23
    %p213 = scmp.eq.s32.totalorder %s212, 0
    %s215 = sadd.s32 %s214, 1
    %s216 = scalar_select %p213, %s214, %s215
    %p219 = pneg %p213
    %p220 = scmp.eq.s32.totalorder %s16, 1
    %p221 = por %p219, %p220
    %p222 = scmp.ne.s32.totalorder %s214, %s217
    %p223 = scmp.eq.s32.totalorder %s16, 0
    %p224 = por %p222, %p223
    %p225 = scmp.ne.s32.totalorder %s214, %s217
    %p226 = scmp.eq.s32.totalorder %s21, 1
    %p227 = por %p225, %p226
    %p228 = scmp.ne.s32.totalorder %s217, %s218
    %p229 = scmp.eq.s32.totalorder %s21, 0
    %p230 = por %p228, %p229
    %p231 = scmp.ne.s32.totalorder %s217, %s218
    %p232 = scmp.eq.s32.totalorder %s22, 1
    %p233 = por %p231, %p232
    %p235 = scmp.ne.s32.totalorder %s218, %s234
    %p236 = scmp.eq.s32.totalorder %s22, 0
    %p237 = por %p235, %p236
    %s238 = ssub.s32 %s16, %s23
    %p239 = scmp.eq.s32.totalorder %s238, 0
    %s241 = sadd.s32 %s240, 1
    %s242 = scalar_select %p239, %s240, %s241
    %p245 = pneg %p239
    %p246 = scmp.eq.s32.totalorder %s16, 1
    %p247 = por %p245, %p246
    %p248 = scmp.ne.s32.totalorder %s240, %s243
    %p249 = scmp.eq.s32.totalorder %s16, 0
    %p250 = por %p248, %p249
    %p251 = scmp.ne.s32.totalorder %s240, %s243
    %p252 = scmp.eq.s32.totalorder %s21, 1
    %p253 = por %p251, %p252
    %p254 = scmp.ne.s32.totalorder %s243, %s244
    %p255 = scmp.eq.s32.totalorder %s21, 0
    %p256 = por %p254, %p255
    %p257 = scmp.ne.s32.totalorder %s243, %s244
    %p258 = scmp.eq.s32.totalorder %s22, 1
    %p259 = por %p257, %p258
    %p261 = scmp.ne.s32.totalorder %s244, %s260
    %p262 = scmp.eq.s32.totalorder %s22, 0
    %p263 = por %p261, %p262
    %p264 = scmp.le.s32.totalorder 1, %s16
    %p265 = scmp.lt.s32.totalorder %s16, 3
    %p266 = pnand %p264, %p265
    %p267 = pneg %p266
    // Predicated region
    $region9: #{srvq3_forward.1} parent=5 // pred_check
      _
    $region10: #{srvq3_forward.1} parent=5 // pred_check_branch
      %269 = sbr.rel (%p266) target = $region12
    $region11: #{srvq3_forward.1} parent=5 // pred_region
      %s270 = ssub.s32 %s16, 1
      // Predicated region
      $region13: #{srvq3_forward.1} parent=11 // pred_check
        %p271 = pneg %p115
      $region14: #{srvq3_forward.1} parent=11 // pred_check_branch
        %273 = sbr.rel (%p271) target = $region16
      $region15: #{srvq3_forward.1} parent=11 // pred_region
        _
      $region16: #{srvq3_forward.1} parent=11 // pred_fallthru
        _
      // Predicated region
      $region17: #{srvq3_forward.1} parent=11 // pred_check
        %p274 = pneg %p136
      $region18: #{srvq3_forward.1} parent=11 // pred_check_branch
        %276 = sbr.rel (%p274) target = $region20
      $region19: #{srvq3_forward.1} parent=11 // pred_region
        _
      $region20: #{srvq3_forward.1} parent=11 // pred_fallthru
        _
      // Predicated region
      $region21: #{srvq3_forward.1} parent=11 // pred_check
        %p277 = pneg %p157
      $region22: #{srvq3_forward.1} parent=11 // pred_check_branch
        %279 = sbr.rel (%p277) target = $region24
      $region23: #{srvq3_forward.1} parent=11 // pred_region
        _
      $region24: #{srvq3_forward.1} parent=11 // pred_fallthru
        _
      // Predicated region
      $region25: #{srvq3_forward.1} parent=11 // pred_check
        %p280 = pneg %p178
      $region26: #{srvq3_forward.1} parent=11 // pred_check_branch
        %282 = sbr.rel (%p280) target = $region28
      $region27: #{srvq3_forward.1} parent=11 // pred_region
        _
      $region28: #{srvq3_forward.1} parent=11 // pred_fallthru
        _
    $region12: #{srvq3_forward.1} parent=5 // pred_fallthru
      _
    %p283 = scmp.lt.s32.totalorder %s16, 2
    // Predicated region
    $region29: #{srvq3_forward.1} parent=5 // pred_check
      %p284 = pneg %p283
    $region30: #{srvq3_forward.1} parent=5 // pred_check_branch
      %286 = sbr.rel (%p284) target = $region32
    $region31: #{srvq3_forward.1} parent=5 // pred_region
      // Predicated region
      $region33: #{srvq3_forward.1} parent=31 // pred_check
        %p287 = pneg %p36
      $region34: #{srvq3_forward.1} parent=31 // pred_check_branch
        %289 = sbr.rel (%p287) target = $region36
      $region35: #{srvq3_forward.1} parent=31 // pred_region
        %p290 = scmp.lt.s32.totalorder %s16, 1
        %s291 = scalar_select %p290, %s16, 1
        %s292 = smul.addr %s291, 8
        %s293 = scalar_lea.vmem %s0, %s292
      $region36: #{srvq3_forward.1} parent=31 // pred_fallthru
        _
      // Predicated region
      $region37: #{srvq3_forward.1} parent=31 // pred_check
        %p294 = pneg %p62
      $region38: #{srvq3_forward.1} parent=31 // pred_check_branch
        %296 = sbr.rel (%p294) target = $region40
      $region39: #{srvq3_forward.1} parent=31 // pred_region
        %p297 = scmp.lt.s32.totalorder %s16, 1
        %s298 = scalar_select %p297, %s16, 1
        %s299 = smul.addr %s298, 8
        %s300 = scalar_lea.vmem %s1, %s299
      $region40: #{srvq3_forward.1} parent=31 // pred_fallthru
        _
      // Predicated region
      $region41: #{srvq3_forward.1} parent=31 // pred_check
        %p301 = pneg %p88
      $region42: #{srvq3_forward.1} parent=31 // pred_check_branch
        %303 = sbr.rel (%p301) target = $region44
      $region43: #{srvq3_forward.1} parent=31 // pred_region
        %p304 = scmp.lt.s32.totalorder %s16, 1
        %s305 = scalar_select %p304, %s16, 1
        %s306 = smul.addr %s305, 8
        %s307 = scalar_lea.vmem %s2, %s306
      $region44: #{srvq3_forward.1} parent=31 // pred_fallthru
        _
    $region32: #{srvq3_forward.1} parent=5 // pred_fallthru
      _
    %p308 = scmp.le.s32.totalorder 1, %s16
    %p309 = scmp.lt.s32.totalorder %s16, 3
    %p310 = pnand %p308, %p309
    %p311 = pneg %p310
    // Predicated region
    $region45: #{srvq3_forward.1} parent=5 // pred_check
      _
    $region46: #{srvq3_forward.1} parent=5 // pred_check_branch
      %313 = sbr.rel (%p310) target = $region48
    $region47: #{srvq3_forward.1} parent=5 // pred_region
      %s314 = ssub.s32 %s16, 1
      %p315 = scmp.lt.s32.totalorder %s21, 1
      %s316 = scalar_select %p315, %s21, 1
      %s317 = smul.addr %s316, 8
      %s318 = scalar_lea.vmem %s0, %s317
      %p319 = pneg %p42
      %p320 = pneg %p39
      %p321 = scmp.lt.s32.totalorder %s21, 1
      %s322 = scalar_select %p321, %s21, 1
      %s323 = smul.addr %s322, 8
      %s324 = scalar_lea.vmem %s1, %s323
      %p325 = pneg %p68
      %p326 = pneg %p65
      %p327 = scmp.lt.s32.totalorder %s21, 1
      %s328 = scalar_select %p327, %s21, 1
      %s329 = smul.addr %s328, 8
      %s330 = scalar_lea.vmem %s2, %s329
      %p331 = pneg %p94
      %p332 = pneg %p91
      %p333 = pneg %p115
      %p334 = pneg %p112
      %p335 = pneg %p136
      %p336 = pneg %p133
      %p337 = pneg %p157
      %p338 = pneg %p154
      %p339 = pneg %p178
      %p340 = pneg %p175
      %p341 = pneg %p204
      %p342 = pneg %p201
      %p343 = scmp.lt.s32.totalorder %s21, 1
      %s344 = scalar_select %p343, %s21, 1
      %s345 = smul.addr %s344, 6
      %s346 = smul.addr %s345, 8
      %s347 = scalar_lea.vmem %s7, %s346
      %p348 = pneg %p230
      %p349 = pneg %p227
      %p350 = scmp.lt.s32.totalorder %s21, 1
      %s351 = scalar_select %p350, %s21, 1
      %s352 = smul.addr %s351, 8
      %s353 = scalar_lea.vmem %s8, %s352
      %p354 = pneg %p256
      %p355 = pneg %p253
      %p356 = scmp.lt.s32.totalorder %s21, 1
      %s357 = scalar_select %p356, %s21, 1
      %s358 = scalar_lea.vmem %s9, %s357
      %p359 = scmp.lt.s32.totalorder %s21, 1
      %s360 = scalar_select %p359, %s21, 1
      %s361 = smul.addr %s360, 8
      %s362 = scalar_lea.vmem %s0, %s361
      %p363 = scmp.lt.s32.totalorder %s21, 1
      %s364 = scalar_select %p363, %s21, 1
      %s365 = smul.addr %s364, 8
      %s366 = scalar_lea.vmem %s1, %s365
      %p367 = scmp.lt.s32.totalorder %s21, 1
      %s368 = scalar_select %p367, %s21, 1
      %s369 = smul.addr %s368, 8
      %s370 = scalar_lea.vmem %s2, %s369
      %p371 = scmp.lt.s32.totalorder %s21, 1
      %s372 = scalar_select %p371, %s21, 1
      %s373 = smul.addr %s372, 6
      %s374 = smul.addr %s373, 8
      %s375 = scalar_lea.vmem %s7, %s374
      %p376 = scmp.lt.s32.totalorder %s21, 1
      %s377 = scalar_select %p376, %s21, 1
      %s378 = smul.addr %s377, 8
      %s379 = scalar_lea.vmem %s8, %s378
      %p380 = scmp.lt.s32.totalorder %s21, 1
      %s381 = scalar_select %p380, %s21, 1
      %s382 = scalar_lea.vmem %s9, %s381
      %v383 = vld [vmem:[%s362] sm:$0xff]
      %v384 = vld [vmem:[%s366] sm:$0xff]
      %v385 = vld [vmem:[%s370] sm:$0xff]
      %v386 = vld [vmem:[%s4] sm:$0x1]
      %v387 = vld [vmem:[%s3] sm:$0xff]
      %v388 = vld [vmem:[%s3 + $0x8] sm:$0xff]
      %v389 = vld [vmem:[%s3 + $0x10] sm:$0xff]
      %v390 = vld [vmem:[%s3 + $0x18] sm:$0xff]
      %v391 = vld [vmem:[%s3 + $0x20] sm:$0xff]
      %v392 = vld [vmem:[%s3 + $0x28] sm:$0xff]
      %v393 = vld [vmem:[%s3 + $0x30] sm:$0xff]
      %v394 = vld [vmem:[%s3 + $0x38] sm:$0xff]
      %v395 = vld [vmem:[%s3 + $0x40] sm:$0xff]
      %v396 = vld [vmem:[%s3 + $0x48] sm:$0xff]
      %v397 = vld [vmem:[%s3 + $0x50] sm:$0xff]
      %v398 = vld [vmem:[%s3 + $0x58] sm:$0xff]
      %v399 = vld [vmem:[%s3 + $0x60] sm:$0xff]
      %v400 = vld [vmem:[%s3 + $0x68] sm:$0xff]
      %v401 = vld [vmem:[%s3 + $0x70] sm:$0xff]
      %v402 = vld [vmem:[%s3 + $0x78] sm:$0xff]
      %v403 = vld [vmem:[%s3 + $0x80] sm:$0xff]
      %v404 = vld [vmem:[%s3 + $0x88] sm:$0xff]
      %v405 = vld [vmem:[%s3 + $0x90] sm:$0xff]
      %v406 = vld [vmem:[%s3 + $0x98] sm:$0xff]
      %v407 = vld [vmem:[%s3 + $0xa0] sm:$0xff]
      %v408 = vld [vmem:[%s3 + $0xa8] sm:$0xff]
      %v409 = vld [vmem:[%s3 + $0xb0] sm:$0xff]
      %v410 = vld [vmem:[%s3 + $0xb8] sm:$0xff]
      %v411 = vld [vmem:[%s3 + $0xc0] sm:$0xff]
      %v412 = vld [vmem:[%s3 + $0xc8] sm:$0xff]
      %v413 = vld [vmem:[%s3 + $0xd0] sm:$0xff]
      %v414 = vld [vmem:[%s3 + $0xd8] sm:$0xff]
      %v415 = vld [vmem:[%s3 + $0xe0] sm:$0xff]
      %v416 = vld [vmem:[%s3 + $0xe8] sm:$0xff]
      %v417 = vld [vmem:[%s3 + $0xf0] sm:$0xff]
      %v418 = vld [vmem:[%s3 + $0xf8] sm:$0xff]
      %v419 = vld [vmem:[%s3 + $0x100] sm:$0xff]
      %v420 = vld [vmem:[%s3 + $0x108] sm:$0xff]
      %v421 = vld [vmem:[%s3 + $0x110] sm:$0xff]
      %v422 = vld [vmem:[%s3 + $0x118] sm:$0xff]
      %v423 = vld [vmem:[%s3 + $0x120] sm:$0xff]
      %v424 = vld [vmem:[%s3 + $0x128] sm:$0xff]
      %v425 = vld [vmem:[%s3 + $0x130] sm:$0xff]
      %v426 = vld [vmem:[%s3 + $0x138] sm:$0xff]
      %v427 = vld [vmem:[%s3 + $0x140] sm:$0xff]
      %v428 = vld [vmem:[%s3 + $0x148] sm:$0xff]
      %v429 = vld [vmem:[%s3 + $0x150] sm:$0xff]
      %v430 = vld [vmem:[%s3 + $0x158] sm:$0xff]
      %v431 = vld [vmem:[%s3 + $0x160] sm:$0xff]
      %v432 = vld [vmem:[%s3 + $0x168] sm:$0xff]
      %v433 = vld [vmem:[%s3 + $0x170] sm:$0xff]
      %v434 = vld [vmem:[%s3 + $0x178] sm:$0xff]
      %435 = vmatprep.subr.mxu0 0.0
      %436 = vmatpush1.msra.mxu0 %v387
      %437 = vmatprep.subr.mxu0 0.0
      %438 = vmatpush1.msra.mxu0 %v388
      %439 = vmatprep.subr.mxu0 0.0
      %440 = vmatpush1.msra.mxu0 %v389
      %441 = vmatprep.subr.mxu0 0.0
      %442 = vmatpush1.msra.mxu0 %v390
      %443 = vmatprep.subr.mxu0 0.0
      %444 = vmatpush1.msra.mxu0 %v391
      %445 = vmatprep.subr.mxu0 0.0
      %446 = vmatpush1.msra.mxu0 %v392
      %447 = vmatprep.subr.mxu0 0.0
      %448 = vmatpush1.msra.mxu0 %v393
      %449 = vmatprep.subr.mxu0 0.0
      %450 = vmatpush1.msra.mxu0 %v394
      %451 = vmatprep.subr.mxu0 0.0
      %452 = vmatpush1.msra.mxu0 %v395
      %453 = vmatprep.subr.mxu0 0.0
      %454 = vmatpush1.msra.mxu0 %v396
      %455 = vmatprep.subr.mxu0 0.0
      %456 = vmatpush1.msra.mxu0 %v397
      %457 = vmatprep.subr.mxu0 0.0
      %458 = vmatpush1.msra.mxu0 %v398
      %459 = vmatprep.subr.mxu0 0.0
      %460 = vmatpush1.msra.mxu0 %v399
      %461 = vmatprep.subr.mxu0 0.0
      %462 = vmatpush1.msra.mxu0 %v400
      %463 = vmatprep.subr.mxu0 0.0
      %464 = vmatpush1.msra.mxu0 %v401
      %465 = vmatprep.subr.mxu0 0.0
      %466 = vmatpush1.msra.mxu0 %v402
      %467 = vmatprep.subr.mxu0 0.0
      %468 = vmatpush1.msra.mxu0 %v403
      %469 = vmatprep.subr.mxu0 0.0
      %470 = vmatpush1.msra.mxu0 %v404
      %471 = vmatprep.subr.mxu0 0.0
      %472 = vmatpush1.msra.mxu0 %v405
      %473 = vmatprep.subr.mxu0 0.0
      %474 = vmatpush1.msra.mxu0 %v406
      %475 = vmatprep.subr.mxu0 0.0
      %476 = vmatpush1.msra.mxu0 %v407
      %477 = vmatprep.subr.mxu0 0.0
      %478 = vmatpush1.msra.mxu0 %v408
      %479 = vmatprep.subr.mxu0 0.0
      %480 = vmatpush1.msra.mxu0 %v409
      %481 = vmatprep.subr.mxu0 0.0
      %482 = vmatpush1.msra.mxu0 %v410
      %483 = vmatprep.subr.mxu0 0.0
      %484 = vmatpush1.msra.mxu0 %v411
      %485 = vmatprep.subr.mxu0 0.0
      %486 = vmatpush1.msra.mxu0 %v412
      %487 = vmatprep.subr.mxu0 0.0
      %488 = vmatpush1.msra.mxu0 %v413
      %489 = vmatprep.subr.mxu0 0.0
      %490 = vmatpush1.msra.mxu0 %v414
      %491 = vmatprep.subr.mxu0 0.0
      %492 = vmatpush1.msra.mxu0 %v415
      %493 = vmatprep.subr.mxu0 0.0
      %494 = vmatpush1.msra.mxu0 %v416
      %495 = vmatprep.subr.mxu0 0.0
      %496 = vmatpush1.msra.mxu0 %v417
      %497 = vmatprep.subr.mxu0 0.0
      %498 = vmatpush1.msra.mxu0 %v418
      %499 = vmatprep.mubr.f32.mxu0 %v384
      %500 = vmatmul.mubr.f32.gmra.mrb[0].mxu0 %v383
      %v501 = vpop.f32.mrb[0].mxu0
      %v502 = vadd.f32 0.0, %v501
      %v503 = vpop.f32.mrb[0].mxu0
      %504 = vdwg.mxu0
      %505 = vmatprep.subr.mxu0 0.0
      %506 = vmatpush1.msra.mxu0 %v419
      %507 = vmatprep.subr.mxu0 0.0
      %508 = vmatpush1.msra.mxu0 %v420
      %509 = vmatprep.subr.mxu0 0.0
      %510 = vmatpush1.msra.mxu0 %v421
      %511 = vmatprep.subr.mxu0 0.0
      %512 = vmatpush1.msra.mxu0 %v422
      %513 = vmatprep.subr.mxu0 0.0
      %514 = vmatpush1.msra.mxu0 %v423
      %515 = vmatprep.subr.mxu0 0.0
      %516 = vmatpush1.msra.mxu0 %v424
      %517 = vmatprep.subr.mxu0 0.0
      %518 = vmatpush1.msra.mxu0 %v425
      %519 = vmatprep.subr.mxu0 0.0
      %520 = vmatpush1.msra.mxu0 %v426
      %521 = vmatprep.subr.mxu0 0.0
      %522 = vmatpush1.msra.mxu0 %v427
      %523 = vmatprep.subr.mxu0 0.0
      %524 = vmatpush1.msra.mxu0 %v428
      %525 = vmatprep.subr.mxu0 0.0
      %526 = vmatpush1.msra.mxu0 %v429
      %527 = vmatprep.subr.mxu0 0.0
      %528 = vmatpush1.msra.mxu0 %v430
      %529 = vmatprep.subr.mxu0 0.0
      %530 = vmatpush1.msra.mxu0 %v431
      %531 = vmatprep.subr.mxu0 0.0
      %532 = vmatpush1.msra.mxu0 %v432
      %533 = vmatprep.subr.mxu0 0.0
      %534 = vmatpush1.msra.mxu0 %v433
      %535 = vmatprep.subr.mxu0 0.0
      %536 = vmatpush1.msra.mxu0 %v434
      %537 = vmatprep.subr.mxu0 0.0
      %538 = vmatpush1.msra.mxu0 0.0
      %539 = vmatprep.subr.mxu0 0.0
      %540 = vmatpush1.msra.mxu0 0.0
      %541 = vmatprep.subr.mxu0 0.0
      %542 = vmatpush1.msra.mxu0 0.0
      %543 = vmatprep.subr.mxu0 0.0
      %544 = vmatpush1.msra.mxu0 0.0
      %545 = vmatprep.subr.mxu0 0.0
      %546 = vmatpush1.msra.mxu0 0.0
      %547 = vmatprep.subr.mxu0 0.0
      %548 = vmatpush1.msra.mxu0 0.0
      %549 = vmatprep.subr.mxu0 0.0
      %550 = vmatpush1.msra.mxu0 0.0
      %551 = vmatprep.subr.mxu0 0.0
      %552 = vmatpush1.msra.mxu0 0.0
      %553 = vmatprep.subr.mxu0 0.0
      %554 = vmatpush1.msra.mxu0 0.0
      %555 = vmatprep.subr.mxu0 0.0
      %556 = vmatpush1.msra.mxu0 0.0
      %557 = vmatprep.subr.mxu0 0.0
      %558 = vmatpush1.msra.mxu0 0.0
      %559 = vmatprep.subr.mxu0 0.0
      %560 = vmatpush1.msra.mxu0 0.0
      %561 = vmatprep.subr.mxu0 0.0
      %562 = vmatpush1.msra.mxu0 0.0
      %563 = vmatprep.subr.mxu0 0.0
      %564 = vmatpush1.msra.mxu0 0.0
      %565 = vmatprep.subr.mxu0 0.0
      %566 = vmatpush1.msra.mxu0 0.0
      %567 = vmatprep.subr.mxu0 0.0
      %568 = vmatpush1.msra.mxu0 0.0
      %569 = vmatprep.mubr.f32.mxu0 0.0
      %570 = vmatmul.mubr.f32.gmra.mrb[0].mxu0 %v385
      %v571 = vpop.f32.mrb[0].mxu0
      %v572 = vadd.f32 %v502, %v571
      %v573 = vpop.f32.mrb[0].mxu0
      %574 = vdwg.mxu0
      %v576 = vlaneseq
      %v577 = vshrl.u32 %v576, 7
      %v578 = vsub.s32 0, %v577
      %v579 = vrot.slane %v386, %v578
      %v581 = vadd.f32 %v579, %v572
      %vm582 = vcmask 64512
      %v583 = vsel %vm582, %v581, inf
      %584 = vmin.xlane.f32.xlu0 %v583
      %v585 = vpop.xlane.xlu0 %584
      %v586 = vlaneseq
      %v587 = vand.u32 %v586, 127
      %vm588 = vcmp.le.f32.partialorder %v581, %v585
      %v589 = vsel %vm588, %v587, 8
      %v590 = vsel %vm582, %v589, 2147483647
      %v591 = vand.u32 %v590, 65535
      %v592 = vshra.s32 %v590, 16
      %v593 = vcvt.s32.f32 %v591
      %v594 = vcvt.s32.f32 %v592
      %595 = vmin.xlane.f32.xlu0 %v594
      %v596 = vpop.xlane.xlu0 %595
      %vm597 = vcmp.eq.f32.partialorder %v594, %v596
      %v598 = vsel %vm597, %v593, inf
      %599 = vmin.xlane.f32.xlu0 %v598
      %v600 = vpop.xlane.xlu0 %599
      %v601 = vcvt.f32.s32 %v600
      %v602 = vcvt.f32.s32 %v596
      %v603 = vshll.u32 %v602, 16
      %v604 = vadd.s32 %v603, %v601
      %vm605 = vcmask 130112
      %v606 = vsel %vm605, %v581, inf
      %607 = vmin.xlane.f32.xlu0 %v606
      %v608 = vpop.xlane.xlu0 %607
      %vm609 = vcmp.le.f32.partialorder %v581, %v608
      %610 = vrot.lane.b32.xlu0 %v587, 8
      %v611 = vpop.permute.xlu0 %610
      %v612 = vsel %vm609, %v611, 8
      %v613 = vsel %vm605, %v612, 2147483647
      %v614 = vand.u32 %v613, 65535
      %v615 = vshra.s32 %v613, 16
      %v616 = vcvt.s32.f32 %v614
      %v617 = vcvt.s32.f32 %v615
      %618 = vmin.xlane.f32.xlu0 %v617
      %v619 = vpop.xlane.xlu0 %618
      %vm620 = vcmp.eq.f32.partialorder %v617, %v619
      %v621 = vsel %vm620, %v616, inf
      %622 = vmin.xlane.f32.xlu0 %v621
      %v623 = vpop.xlane.xlu0 %622
      %v624 = vcvt.f32.s32 %v623
      %v625 = vcvt.f32.s32 %v619
      %v626 = vshll.u32 %v625, 16
      %v627 = vadd.s32 %v626, %v624
      %vm628 = vcmask 195712
      %v629 = vsel %vm628, %v581, inf
      %630 = vmin.xlane.f32.xlu0 %v629
      %v631 = vpop.xlane.xlu0 %630
      %vm632 = vcmp.le.f32.partialorder %v581, %v631
      %633 = vrot.lane.b32.xlu0 %v587, 16
      %v634 = vpop.permute.xlu0 %633
      %v635 = vsel %vm632, %v634, 8
      %v636 = vsel %vm628, %v635, 2147483647
      %v637 = vand.u32 %v636, 65535
      %v638 = vshra.s32 %v636, 16
      %v639 = vcvt.s32.f32 %v637
      %v640 = vcvt.s32.f32 %v638
      %641 = vmin.xlane.f32.xlu0 %v640
      %v642 = vpop.xlane.xlu0 %641
      %vm643 = vcmp.eq.f32.partialorder %v640, %v642
      %v644 = vsel %vm643, %v639, inf
      %645 = vmin.xlane.f32.xlu0 %v644
      %v646 = vpop.xlane.xlu0 %645
      %v647 = vcvt.f32.s32 %v646
      %v648 = vcvt.f32.s32 %v642
      %v649 = vshll.u32 %v648, 16
      %v650 = vadd.s32 %v649, %v647
      %vm651 = vcmp.eq.s32.totalorder %v587, %v604
      %v652 = vadd.s32 %v627, 8
      %vm653 = vcmp.eq.s32.totalorder %v587, %v652
      %vm654 = vmor %vm651, %vm653
      %v655 = vadd.s32 %v650, 16
      %vm656 = vcmp.eq.s32.totalorder %v587, %v655
      %vm657 = vmor %vm654, %vm656
      %v658 = vsel %vm657, 1, 0
      %v659 = vcvt.s32.f32 %v658
      %v660 = vld [vmem:[%s5] sm:$0xff]
      %v661 = vld [vmem:[%s5 + $0x8] sm:$0xff]
      %v662 = vld [vmem:[%s5 + $0x10] sm:$0xff]
      %v663 = vld [vmem:[%s5 + $0x18] sm:$0xff]
      %v664 = vld [vmem:[%s5 + $0x20] sm:$0xff]
      %v665 = vld [vmem:[%s5 + $0x28] sm:$0xff]
      %v666 = vld [vmem:[%s5 + $0x30] sm:$0xff]
      %v667 = vld [vmem:[%s5 + $0x38] sm:$0xff]
      %v668 = vld [vmem:[%s5 + $0x40] sm:$0xff]
      %v669 = vld [vmem:[%s6] sm:$0xff]
      %v670 = vld [vmem:[%s6 + $0x8] sm:$0xff]
      %v671 = vld [vmem:[%s6 + $0x10] sm:$0xff]
      %v672 = vld [vmem:[%s6 + $0x18] sm:$0xff]
      %v673 = vld [vmem:[%s6 + $0x20] sm:$0xff]
      %v674 = vld [vmem:[%s6 + $0x28] sm:$0xff]
      %v675 = vld [vmem:[%s6 + $0x30] sm:$0xff]
      %v676 = vld [vmem:[%s6 + $0x38] sm:$0xff]
      %v677 = vld [vmem:[%s6 + $0x40] sm:$0xff]
      %vm678 = vcmask 195584
      %v680 = vsel %vm678, %v659, 0
      %682 = vmatprep.subr.mxu0 %v670
      %683 = vmatpush1.msra.mxu0 %v669
      %684 = vmatprep.subr.mxu0 %v673
      %685 = vmatpush1.msra.mxu0 %v672
      %686 = vmatprep.subr.mxu0 %v676
      %687 = vmatpush1.msra.mxu0 %v675
      %688 = vmatprep.subr.mxu0 0.0
      %689 = vmatpush1.msra.mxu0 0.0
      %690 = vmatprep.subr.mxu0 0.0
      %691 = vmatpush1.msra.mxu0 0.0
      %692 = vmatprep.subr.mxu0 0.0
      %693 = vmatpush1.msra.mxu0 0.0
      %694 = vmatprep.subr.mxu0 0.0
      %695 = vmatpush1.msra.mxu0 0.0
      %696 = vmatprep.subr.mxu0 0.0
      %697 = vmatpush1.msra.mxu0 0.0
      %698 = vmatprep.subr.mxu0 0.0
      %699 = vmatpush1.msra.mxu0 0.0
      %700 = vmatprep.subr.mxu0 0.0
      %701 = vmatpush1.msra.mxu0 0.0
      %702 = vmatprep.subr.mxu0 0.0
      %703 = vmatpush1.msra.mxu0 0.0
      %704 = vmatprep.subr.mxu0 0.0
      %705 = vmatpush1.msra.mxu0 0.0
      %706 = vmatprep.subr.mxu0 0.0
      %707 = vmatpush1.msra.mxu0 0.0
      %708 = vmatprep.subr.mxu0 0.0
      %709 = vmatpush1.msra.mxu0 0.0
      %710 = vmatprep.subr.mxu0 0.0
      %711 = vmatpush1.msra.mxu0 0.0
      %712 = vmatprep.subr.mxu0 0.0
      %713 = vmatpush1.msra.mxu0 0.0
      %714 = vmatprep.subr.mxu0 0.0
      %715 = vmatpush1.msra.mxu0 0.0
      %716 = vmatprep.subr.mxu0 0.0
      %717 = vmatpush1.msra.mxu0 0.0
      %718 = vmatprep.subr.mxu0 0.0
      %719 = vmatpush1.msra.mxu0 0.0
      %720 = vmatprep.subr.mxu0 0.0
      %721 = vmatpush1.msra.mxu0 0.0
      %722 = vmatprep.subr.mxu0 0.0
      %723 = vmatpush1.msra.mxu0 0.0
      %724 = vmatprep.subr.mxu0 0.0
      %725 = vmatpush1.msra.mxu0 0.0
      %726 = vmatprep.subr.mxu0 0.0
      %727 = vmatpush1.msra.mxu0 0.0
      %728 = vmatprep.subr.mxu0 0.0
      %729 = vmatpush1.msra.mxu0 0.0
      %730 = vmatprep.subr.mxu0 0.0
      %731 = vmatpush1.msra.mxu0 0.0
      %732 = vmatprep.subr.mxu0 0.0
      %733 = vmatpush1.msra.mxu0 0.0
      %734 = vmatprep.subr.mxu0 0.0
      %735 = vmatpush1.msra.mxu0 0.0
      %736 = vmatprep.subr.mxu0 0.0
      %737 = vmatpush1.msra.mxu0 0.0
      %738 = vmatprep.subr.mxu0 0.0
      %739 = vmatpush1.msra.mxu0 0.0
      %740 = vmatprep.subr.mxu0 0.0
      %741 = vmatpush1.msra.mxu0 0.0
      %742 = vmatprep.subr.mxu0 0.0
      %743 = vmatpush1.msra.mxu0 0.0
      %744 = vmatprep.subr.mxu0 0.0
      %745 = vmatpush1.msra.mxu0 0.0
      %746 = vmatprep.mubr.f32.mxu0 0.0
      %747 = vmatmul.mubr.f32.gmra.mrb[0].mxu0 %v680
      %v748 = vpop.f32.mrb[0].mxu0
      %v749 = vadd.f32 0.0, %v748
      %v750 = vpop.f32.mrb[0].mxu0
      %v751 = vadd.f32 0.0, %v750
      %752 = vdwg.mxu0
      %753 = vmatprep.subr.mxu0 0.0
      %754 = vmatpush1.msra.mxu0 %v671
      %755 = vmatprep.subr.mxu0 0.0
      %756 = vmatpush1.msra.mxu0 %v674
      %757 = vmatprep.subr.mxu0 0.0
      %758 = vmatpush1.msra.mxu0 %v677
      %759 = vmatprep.subr.mxu0 0.0
      %760 = vmatpush1.msra.mxu0 0.0
      %761 = vmatprep.subr.mxu0 0.0
      %762 = vmatpush1.msra.mxu0 0.0
      %763 = vmatprep.subr.mxu0 0.0
      %764 = vmatpush1.msra.mxu0 0.0
      %765 = vmatprep.subr.mxu0 0.0
      %766 = vmatpush1.msra.mxu0 0.0
      %767 = vmatprep.subr.mxu0 0.0
      %768 = vmatpush1.msra.mxu0 0.0
      %769 = vmatprep.subr.mxu0 0.0
      %770 = vmatpush1.msra.mxu0 0.0
      %771 = vmatprep.subr.mxu0 0.0
      %772 = vmatpush1.msra.mxu0 0.0
      %773 = vmatprep.subr.mxu0 0.0
      %774 = vmatpush1.msra.mxu0 0.0
      %775 = vmatprep.subr.mxu0 0.0
      %776 = vmatpush1.msra.mxu0 0.0
      %777 = vmatprep.subr.mxu0 0.0
      %778 = vmatpush1.msra.mxu0 0.0
      %779 = vmatprep.subr.mxu0 0.0
      %780 = vmatpush1.msra.mxu0 0.0
      %781 = vmatprep.subr.mxu0 0.0
      %782 = vmatpush1.msra.mxu0 0.0
      %783 = vmatprep.subr.mxu0 0.0
      %784 = vmatpush1.msra.mxu0 0.0
      %785 = vmatprep.subr.mxu0 0.0
      %786 = vmatpush1.msra.mxu0 0.0
      %787 = vmatprep.subr.mxu0 0.0
      %788 = vmatpush1.msra.mxu0 0.0
      %789 = vmatprep.subr.mxu0 0.0
      %790 = vmatpush1.msra.mxu0 0.0
      %791 = vmatprep.subr.mxu0 0.0
      %792 = vmatpush1.msra.mxu0 0.0
      %793 = vmatprep.subr.mxu0 0.0
      %794 = vmatpush1.msra.mxu0 0.0
      %795 = vmatprep.subr.mxu0 0.0
      %796 = vmatpush1.msra.mxu0 0.0
      %797 = vmatprep.subr.mxu0 0.0
      %798 = vmatpush1.msra.mxu0 0.0
      %799 = vmatprep.subr.mxu0 0.0
      %800 = vmatpush1.msra.mxu0 0.0
      %801 = vmatprep.subr.mxu0 0.0
      %802 = vmatpush1.msra.mxu0 0.0
      %803 = vmatprep.subr.mxu0 0.0
      %804 = vmatpush1.msra.mxu0 0.0
      %805 = vmatprep.subr.mxu0 0.0
      %806 = vmatpush1.msra.mxu0 0.0
      %807 = vmatprep.subr.mxu0 0.0
      %808 = vmatpush1.msra.mxu0 0.0
      %809 = vmatprep.subr.mxu0 0.0
      %810 = vmatpush1.msra.mxu0 0.0
      %811 = vmatprep.subr.mxu0 0.0
      %812 = vmatpush1.msra.mxu0 0.0
      %813 = vmatprep.subr.mxu0 0.0
      %814 = vmatpush1.msra.mxu0 0.0
      %815 = vmatprep.subr.mxu0 0.0
      %816 = vmatpush1.msra.mxu0 0.0
      %817 = vmatprep.mubr.f32.mxu0 0.0
      %818 = vmatmul.mubr.f32.gmra.mrb[0].mxu0 %v680
      %v819 = vpop.f32.mrb[0].mxu0
      %v820 = vadd.f32 0.0, %v819
      %v821 = vpop.f32.mrb[0].mxu0
      %822 = vdwg.mxu0
      %823 = vmatprep.subr.mxu0 %v661
      %824 = vmatpush1.msra.mxu0 %v660
      %825 = vmatprep.subr.mxu0 %v664
      %826 = vmatpush1.msra.mxu0 %v663
      %827 = vmatprep.subr.mxu0 %v667
      %828 = vmatpush1.msra.mxu0 %v666
      %829 = vmatprep.subr.mxu0 0.0
      %830 = vmatpush1.msra.mxu0 0.0
      %831 = vmatprep.subr.mxu0 0.0
      %832 = vmatpush1.msra.mxu0 0.0
      %833 = vmatprep.subr.mxu0 0.0
      %834 = vmatpush1.msra.mxu0 0.0
      %835 = vmatprep.subr.mxu0 0.0
      %836 = vmatpush1.msra.mxu0 0.0
      %837 = vmatprep.subr.mxu0 0.0
      %838 = vmatpush1.msra.mxu0 0.0
      %839 = vmatprep.subr.mxu0 0.0
      %840 = vmatpush1.msra.mxu0 0.0
      %841 = vmatprep.subr.mxu0 0.0
      %842 = vmatpush1.msra.mxu0 0.0
      %843 = vmatprep.subr.mxu0 0.0
      %844 = vmatpush1.msra.mxu0 0.0
      %845 = vmatprep.subr.mxu0 0.0
      %846 = vmatpush1.msra.mxu0 0.0
      %847 = vmatprep.subr.mxu0 0.0
      %848 = vmatpush1.msra.mxu0 0.0
      %849 = vmatprep.subr.mxu0 0.0
      %850 = vmatpush1.msra.mxu0 0.0
      %851 = vmatprep.subr.mxu0 0.0
      %852 = vmatpush1.msra.mxu0 0.0
      %853 = vmatprep.subr.mxu0 0.0
      %854 = vmatpush1.msra.mxu0 0.0
      %855 = vmatprep.subr.mxu0 0.0
      %856 = vmatpush1.msra.mxu0 0.0
      %857 = vmatprep.subr.mxu0 0.0
      %858 = vmatpush1.msra.mxu0 0.0
      %859 = vmatprep.subr.mxu0 0.0
      %860 = vmatpush1.msra.mxu0 0.0
      %861 = vmatprep.subr.mxu0 0.0
      %862 = vmatpush1.msra.mxu0 0.0
      %863 = vmatprep.subr.mxu0 0.0
      %864 = vmatpush1.msra.mxu0 0.0
      %865 = vmatprep.subr.mxu0 0.0
      %866 = vmatpush1.msra.mxu0 0.0
      %867 = vmatprep.subr.mxu0 0.0
      %868 = vmatpush1.msra.mxu0 0.0
      %869 = vmatprep.subr.mxu0 0.0
      %870 = vmatpush1.msra.mxu0 0.0
      %871 = vmatprep.subr.mxu0 0.0
      %872 = vmatpush1.msra.mxu0 0.0
      %873 = vmatprep.subr.mxu0 0.0
      %874 = vmatpush1.msra.mxu0 0.0
      %875 = vmatprep.subr.mxu0 0.0
      %876 = vmatpush1.msra.mxu0 0.0
      %877 = vmatprep.subr.mxu0 0.0
      %878 = vmatpush1.msra.mxu0 0.0
      %879 = vmatprep.subr.mxu0 0.0
      %880 = vmatpush1.msra.mxu0 0.0
      %881 = vmatprep.subr.mxu0 0.0
      %882 = vmatpush1.msra.mxu0 0.0
      %883 = vmatprep.subr.mxu0 0.0
      %884 = vmatpush1.msra.mxu0 0.0
      %885 = vmatprep.subr.mxu0 0.0
      %886 = vmatpush1.msra.mxu0 0.0
      %887 = vmatprep.mubr.f32.mxu0 0.0
      %888 = vmatmul.mubr.f32.gmra.mrb[0].mxu0 %v680
      %v889 = vpop.f32.mrb[0].mxu0
      %v890 = vadd.f32 %v749, %v889
      %v891 = vpop.f32.mrb[0].mxu0
      %v892 = vadd.f32 %v751, %v891
      %893 = vdwg.mxu0
      %894 = vmatprep.subr.mxu0 0.0
      %895 = vmatpush1.msra.mxu0 %v662
      %896 = vmatprep.subr.mxu0 0.0
      %897 = vmatpush1.msra.mxu0 %v665
      %898 = vmatprep.subr.mxu0 0.0
      %899 = vmatpush1.msra.mxu0 %v668
      %900 = vmatprep.subr.mxu0 0.0
      %901 = vmatpush1.msra.mxu0 0.0
      %902 = vmatprep.subr.mxu0 0.0
      %903 = vmatpush1.msra.mxu0 0.0
      %904 = vmatprep.subr.mxu0 0.0
      %905 = vmatpush1.msra.mxu0 0.0
      %906 = vmatprep.subr.mxu0 0.0
      %907 = vmatpush1.msra.mxu0 0.0
      %908 = vmatprep.subr.mxu0 0.0
      %909 = vmatpush1.msra.mxu0 0.0
      %910 = vmatprep.subr.mxu0 0.0
      %911 = vmatpush1.msra.mxu0 0.0
      %912 = vmatprep.subr.mxu0 0.0
      %913 = vmatpush1.msra.mxu0 0.0
      %914 = vmatprep.subr.mxu0 0.0
      %915 = vmatpush1.msra.mxu0 0.0
      %916 = vmatprep.subr.mxu0 0.0
      %917 = vmatpush1.msra.mxu0 0.0
      %918 = vmatprep.subr.mxu0 0.0
      %919 = vmatpush1.msra.mxu0 0.0
      %920 = vmatprep.subr.mxu0 0.0
      %921 = vmatpush1.msra.mxu0 0.0
      %922 = vmatprep.subr.mxu0 0.0
      %923 = vmatpush1.msra.mxu0 0.0
      %924 = vmatprep.subr.mxu0 0.0
      %925 = vmatpush1.msra.mxu0 0.0
      %926 = vmatprep.subr.mxu0 0.0
      %927 = vmatpush1.msra.mxu0 0.0
      %928 = vmatprep.subr.mxu0 0.0
      %929 = vmatpush1.msra.mxu0 0.0
      %930 = vmatprep.subr.mxu0 0.0
      %931 = vmatpush1.msra.mxu0 0.0
      %932 = vmatprep.subr.mxu0 0.0
      %933 = vmatpush1.msra.mxu0 0.0
      %934 = vmatprep.subr.mxu0 0.0
      %935 = vmatpush1.msra.mxu0 0.0
      %936 = vmatprep.subr.mxu0 0.0
      %937 = vmatpush1.msra.mxu0 0.0
      %938 = vmatprep.subr.mxu0 0.0
      %939 = vmatpush1.msra.mxu0 0.0
      %940 = vmatprep.subr.mxu0 0.0
      %941 = vmatpush1.msra.mxu0 0.0
      %942 = vmatprep.subr.mxu0 0.0
      %943 = vmatpush1.msra.mxu0 0.0
      %944 = vmatprep.subr.mxu0 0.0
      %945 = vmatpush1.msra.mxu0 0.0
      %946 = vmatprep.subr.mxu0 0.0
      %947 = vmatpush1.msra.mxu0 0.0
      %948 = vmatprep.subr.mxu0 0.0
      %949 = vmatpush1.msra.mxu0 0.0
      %950 = vmatprep.subr.mxu0 0.0
      %951 = vmatpush1.msra.mxu0 0.0
      %952 = vmatprep.subr.mxu0 0.0
      %953 = vmatpush1.msra.mxu0 0.0
      %954 = vmatprep.subr.mxu0 0.0
      %955 = vmatpush1.msra.mxu0 0.0
      %956 = vmatprep.subr.mxu0 0.0
      %957 = vmatpush1.msra.mxu0 0.0
      %958 = vmatprep.mubr.f32.mxu0 0.0
      %959 = vmatmul.mubr.f32.gmra.mrb[0].mxu0 %v680
      %v960 = vpop.f32.mrb[0].mxu0
      %v961 = vadd.f32 %v820, %v960
      %v962 = vpop.f32.mrb[0].mxu0
      %963 = vdwg.mxu0
      %v964 = vsub.f32 %v383, %v890
      %v965 = vsub.f32 %v384, %v892
      %v966 = vsub.f32 %v385, %v961
      %s967 = scalar_lea.vmem %s4, 1
      %v968 = vld [vmem:[%s967] sm:$0x1]
      %s969 = scalar_lea.vmem %s3, 384
      %v970 = vld [vmem:[%s969] sm:$0xff]
      %v971 = vld [vmem:[%s969 + $0x8] sm:$0xff]
      %v972 = vld [vmem:[%s969 + $0x10] sm:$0xff]
      %v973 = vld [vmem:[%s969 + $0x18] sm:$0xff]
      %v974 = vld [vmem:[%s969 + $0x20] sm:$0xff]
      %v975 = vld [vmem:[%s969 + $0x28] sm:$0xff]
      %v976 = vld [vmem:[%s969 + $0x30] sm:$0xff]
      %v977 = vld [vmem:[%s969 + $0x38] sm:$0xff]
      %v978 = vld [vmem:[%s969 + $0x40] sm:$0xff]
      %v979 = vld [vmem:[%s969 + $0x48] sm:$0xff]
      %v980 = vld [vmem:[%s969 + $0x50] sm:$0xff]
      %v981 = vld [vmem:[%s969 + $0x58] sm:$0xff]
      %v982 = vld [vmem:[%s969 + $0x60] sm:$0xff]
      %v983 = vld [vmem:[%s969 + $0x68] sm:$0xff]
      %v984 = vld [vmem:[%s969 + $0x70] sm:$0xff]
      %v985 = vld [vmem:[%s969 + $0x78] sm:$0xff]
      %v986 = vld [vmem:[%s969 + $0x80] sm:$0xff]
      %v987 = vld [vmem:[%s969 + $0x88] sm:$0xff]
      %v988 = vld [vmem:[%s969 + $0x90] sm:$0xff]
      %v989 = vld [vmem:[%s969 + $0x98] sm:$0xff]
      %v990 = vld [vmem:[%s969 + $0xa0] sm:$0xff]
      %v991 = vld [vmem:[%s969 + $0xa8] sm:$0xff]
      %v992 = vld [vmem:[%s969 + $0xb0] sm:$0xff]
      %v993 = vld [vmem:[%s969 + $0xb8] sm:$0xff]
      %v994 = vld [vmem:[%s969 + $0xc0] sm:$0xff]
      %v995 = vld [vmem:[%s969 + $0xc8] sm:$0xff]
      %v996 = vld [vmem:[%s969 + $0xd0] sm:$0xff]
      %v997 = vld [vmem:[%s969 + $0xd8] sm:$0xff]
      %v998 = vld [vmem:[%s969 + $0xe0] sm:$0xff]
      %v999 = vld [vmem:[%s969 + $0xe8] sm:$0xff]
      %v1000 = vld [vmem:[%s969 + $0xf0] sm:$0xff]
      %v1001 = vld [vmem:[%s969 + $0xf8] sm:$0xff]
      %v1002 = vld [vmem:[%s969 + $0x100] sm:$0xff]
      %v1003 = vld [vmem:[%s969 + $0x108] sm:$0xff]
      %v1004 = vld [vmem:[%s969 + $0x110] sm:$0xff]
      %v1005 = vld [vmem:[%s969 + $0x118] sm:$0xff]
      %v1006 = vld [vmem:[%s969 + $0x120] sm:$0xff]
      %v1007 = vld [vmem:[%s969 + $0x128] sm:$0xff]
      %v1008 = vld [vmem:[%s969 + $0x130] sm:$0xff]
      %v1009 = vld [vmem:[%s969 + $0x138] sm:$0xff]
      %v1010 = vld [vmem:[%s969 + $0x140] sm:$0xff]
      %v1011 = vld [vmem:[%s969 + $0x148] sm:$0xff]
      %v1012 = vld [vmem:[%s969 + $0x150] sm:$0xff]
      %v1013 = vld [vmem:[%s969 + $0x158] sm:$0xff]
      %v1014 = vld [vmem:[%s969 + $0x160] sm:$0xff]
      %v1015 = vld [vmem:[%s969 + $0x168] sm:$0xff]
      %v1016 = vld [vmem:[%s969 + $0x170] sm:$0xff]
      %v1017 = vld [vmem:[%s969 + $0x178] sm:$0xff]
      %1018 = vmatprep.subr.mxu0 0.0
      %1019 = vmatpush1.msra.mxu0 %v970
      %1020 = vmatprep.subr.mxu0 0.0
      %1021 = vmatpush1.msra.mxu0 %v971
      %1022 = vmatprep.subr.mxu0 0.0
      %1023 = vmatpush1.msra.mxu0 %v972
      %1024 = vmatprep.subr.mxu0 0.0
      %1025 = vmatpush1.msra.mxu0 %v973
      %1026 = vmatprep.subr.mxu0 0.0
      %1027 = vmatpush1.msra.mxu0 %v974
      %1028 = vmatprep.subr.mxu0 0.0
      %1029 = vmatpush1.msra.mxu0 %v975
      %1030 = vmatprep.subr.mxu0 0.0
      %1031 = vmatpush1.msra.mxu0 %v976
      %1032 = vmatprep.subr.mxu0 0.0
      %1033 = vmatpush1.msra.mxu0 %v977
      %1034 = vmatprep.subr.mxu0 0.0
      %1035 = vmatpush1.msra.mxu0 %v978
      %1036 = vmatprep.subr.mxu0 0.0
      %1037 = vmatpush1.msra.mxu0 %v979
      %1038 = vmatprep.subr.mxu0 0.0
      %1039 = vmatpush1.msra.mxu0 %v980
      %1040 = vmatprep.subr.mxu0 0.0
      %1041 = vmatpush1.msra.mxu0 %v981
      %1042 = vmatprep.subr.mxu0 0.0
      %1043 = vmatpush1.msra.mxu0 %v982
      %1044 = vmatprep.subr.mxu0 0.0
      %1045 = vmatpush1.msra.mxu0 %v983
      %1046 = vmatprep.subr.mxu0 0.0
      %1047 = vmatpush1.msra.mxu0 %v984
      %1048 = vmatprep.subr.mxu0 0.0
      %1049 = vmatpush1.msra.mxu0 %v985
      %1050 = vmatprep.subr.mxu0 0.0
      %1051 = vmatpush1.msra.mxu0 %v986
      %1052 = vmatprep.subr.mxu0 0.0
      %1053 = vmatpush1.msra.mxu0 %v987
      %1054 = vmatprep.subr.mxu0 0.0
      %1055 = vmatpush1.msra.mxu0 %v988
      %1056 = vmatprep.subr.mxu0 0.0
      %1057 = vmatpush1.msra.mxu0 %v989
      %1058 = vmatprep.subr.mxu0 0.0
      %1059 = vmatpush1.msra.mxu0 %v990
      %1060 = vmatprep.subr.mxu0 0.0
      %1061 = vmatpush1.msra.mxu0 %v991
      %1062 = vmatprep.subr.mxu0 0.0
      %1063 = vmatpush1.msra.mxu0 %v992
      %1064 = vmatprep.subr.mxu0 0.0
      %1065 = vmatpush1.msra.mxu0 %v993
      %1066 = vmatprep.subr.mxu0 0.0
      %1067 = vmatpush1.msra.mxu0 %v994
      %1068 = vmatprep.subr.mxu0 0.0
      %1069 = vmatpush1.msra.mxu0 %v995
      %1070 = vmatprep.subr.mxu0 0.0
      %1071 = vmatpush1.msra.mxu0 %v996
      %1072 = vmatprep.subr.mxu0 0.0
      %1073 = vmatpush1.msra.mxu0 %v997
      %1074 = vmatprep.subr.mxu0 0.0
      %1075 = vmatpush1.msra.mxu0 %v998
      %1076 = vmatprep.subr.mxu0 0.0
      %1077 = vmatpush1.msra.mxu0 %v999
      %1078 = vmatprep.subr.mxu0 0.0
      %1079 = vmatpush1.msra.mxu0 %v1000
      %1080 = vmatprep.subr.mxu0 0.0
      %1081 = vmatpush1.msra.mxu0 %v1001
      %1082 = vmatprep.mubr.f32.mxu0 %v965
      %1083 = vmatmul.mubr.f32.gmra.mrb[0].mxu0 %v964
      %v1084 = vpop.f32.mrb[0].mxu0
      %v1085 = vadd.f32 0.0, %v1084
      %v1086 = vpop.f32.mrb[0].mxu0
      %1087 = vdwg.mxu0
      %1088 = vmatprep.subr.mxu0 0.0
      %1089 = vmatpush1.msra.mxu0 %v1002
      %1090 = vmatprep.subr.mxu0 0.0
      %1091 = vmatpush1.msra.mxu0 %v1003
      %1092 = vmatprep.subr.mxu0 0.0
      %1093 = vmatpush1.msra.mxu0 %v1004
      %1094 = vmatprep.subr.mxu0 0.0
      %1095 = vmatpush1.msra.mxu0 %v1005
      %1096 = vmatprep.subr.mxu0 0.0
      %1097 = vmatpush1.msra.mxu0 %v1006
      %1098 = vmatprep.subr.mxu0 0.0
      %1099 = vmatpush1.msra.mxu0 %v1007
      %1100 = vmatprep.subr.mxu0 0.0
      %1101 = vmatpush1.msra.mxu0 %v1008
      %1102 = vmatprep.subr.mxu0 0.0
      %1103 = vmatpush1.msra.mxu0 %v1009
      %1104 = vmatprep.subr.mxu0 0.0
      %1105 = vmatpush1.msra.mxu0 %v1010
      %1106 = vmatprep.subr.mxu0 0.0
      %1107 = vmatpush1.msra.mxu0 %v1011
      %1108 = vmatprep.subr.mxu0 0.0
      %1109 = vmatpush1.msra.mxu0 %v1012
      %1110 = vmatprep.subr.mxu0 0.0
      %1111 = vmatpush1.msra.mxu0 %v1013
      %1112 = vmatprep.subr.mxu0 0.0
      %1113 = vmatpush1.msra.mxu0 %v1014
      %1114 = vmatprep.subr.mxu0 0.0
      %1115 = vmatpush1.msra.mxu0 %v1015
      %1116 = vmatprep.subr.mxu0 0.0
      %1117 = vmatpush1.msra.mxu0 %v1016
      %1118 = vmatprep.subr.mxu0 0.0
      %1119 = vmatpush1.msra.mxu0 %v1017
      %1120 = vmatprep.subr.mxu0 0.0
      %1121 = vmatpush1.msra.mxu0 0.0
      %1122 = vmatprep.subr.mxu0 0.0
      %1123 = vmatpush1.msra.mxu0 0.0
      %1124 = vmatprep.subr.mxu0 0.0
      %1125 = vmatpush1.msra.mxu0 0.0
      %1126 = vmatprep.subr.mxu0 0.0
      %1127 = vmatpush1.msra.mxu0 0.0
      %1128 = vmatprep.subr.mxu0 0.0
      %1129 = vmatpush1.msra.mxu0 0.0
      %1130 = vmatprep.subr.mxu0 0.0
      %1131 = vmatpush1.msra.mxu0 0.0
      %1132 = vmatprep.subr.mxu0 0.0
      %1133 = vmatpush1.msra.mxu0 0.0
      %1134 = vmatprep.subr.mxu0 0.0
      %1135 = vmatpush1.msra.mxu0 0.0
      %1136 = vmatprep.subr.mxu0 0.0
      %1137 = vmatpush1.msra.mxu0 0.0
      %1138 = vmatprep.subr.mxu0 0.0
      %1139 = vmatpush1.msra.mxu0 0.0
      %1140 = vmatprep.subr.mxu0 0.0
      %1141 = vmatpush1.msra.mxu0 0.0
      %1142 = vmatprep.subr.mxu0 0.0
      %1143 = vmatpush1.msra.mxu0 0.0
      %1144 = vmatprep.subr.mxu0 0.0
      %1145 = vmatpush1.msra.mxu0 0.0
      %1146 = vmatprep.subr.mxu0 0.0
      %1147 = vmatpush1.msra.mxu0 0.0
      %1148 = vmatprep.subr.mxu0 0.0
      %1149 = vmatpush1.msra.mxu0 0.0
      %1150 = vmatprep.subr.mxu0 0.0
      %1151 = vmatpush1.msra.mxu0 0.0
      %1152 = vmatprep.mubr.f32.mxu0 0.0
      %1153 = vmatmul.mubr.f32.gmra.mrb[0].mxu0 %v966
      %v1154 = vpop.f32.mrb[0].mxu0
      %v1155 = vadd.f32 %v1085, %v1154
      %v1156 = vpop.f32.mrb[0].mxu0
      %1157 = vdwg.mxu0
      %v1159 = vlaneseq
      %v1160 = vshrl.u32 %v1159, 7
      %v1161 = vsub.s32 0, %v1160
      %v1162 = vrot.slane %v968, %v1161
      %v1164 = vadd.f32 %v1162, %v1155
      %v1165 = vsel %vm582, %v1164, inf
      %1166 = vmin.xlane.f32.xlu0 %v1165
      %v1167 = vpop.xlane.xlu0 %1166
      %vm1168 = vcmp.le.f32.partialorder %v1164, %v1167
      %v1169 = vsel %vm1168, %v587, 8
      %v1170 = vsel %vm582, %v1169, 2147483647
      %v1171 = vand.u32 %v1170, 65535
      %v1172 = vshra.s32 %v1170, 16
      %v1173 = vcvt.s32.f32 %v1171
      %v1174 = vcvt.s32.f32 %v1172
      %1175 = vmin.xlane.f32.xlu0 %v1174
      %v1176 = vpop.xlane.xlu0 %1175
      %vm1177 = vcmp.eq.f32.partialorder %v1174, %v1176
      %v1178 = vsel %vm1177, %v1173, inf
      %1179 = vmin.xlane.f32.xlu0 %v1178
      %v1180 = vpop.xlane.xlu0 %1179
      %v1181 = vcvt.f32.s32 %v1180
      %v1182 = vcvt.f32.s32 %v1176
      %v1183 = vshll.u32 %v1182, 16
      %v1184 = vadd.s32 %v1183, %v1181
      %v1185 = vsel %vm605, %v1164, inf
      %1186 = vmin.xlane.f32.xlu0 %v1185
      %v1187 = vpop.xlane.xlu0 %1186
      %vm1188 = vcmp.le.f32.partialorder %v1164, %v1187
      %v1189 = vsel %vm1188, %v611, 8
      %v1190 = vsel %vm605, %v1189, 2147483647
      %v1191 = vand.u32 %v1190, 65535
      %v1192 = vshra.s32 %v1190, 16
      %v1193 = vcvt.s32.f32 %v1191
      %v1194 = vcvt.s32.f32 %v1192
      %1195 = vmin.xlane.f32.xlu0 %v1194
      %v1196 = vpop.xlane.xlu0 %1195
      %vm1197 = vcmp.eq.f32.partialorder %v1194, %v1196
      %v1198 = vsel %vm1197, %v1193, inf
      %1199 = vmin.xlane.f32.xlu0 %v1198
      %v1200 = vpop.xlane.xlu0 %1199
      %v1201 = vcvt.f32.s32 %v1200
      %v1202 = vcvt.f32.s32 %v1196
      %v1203 = vshll.u32 %v1202, 16
      %v1204 = vadd.s32 %v1203, %v1201
      %v1205 = vsel %vm628, %v1164, inf
      %1206 = vmin.xlane.f32.xlu0 %v1205
      %v1207 = vpop.xlane.xlu0 %1206
      %vm1208 = vcmp.le.f32.partialorder %v1164, %v1207
      %v1209 = vsel %vm1208, %v634, 8
      %v1210 = vsel %vm628, %v1209, 2147483647
      %v1211 = vand.u32 %v1210, 65535
      %v1212 = vshra.s32 %v1210, 16
      %v1213 = vcvt.s32.f32 %v1211
      %v1214 = vcvt.s32.f32 %v1212
      %1215 = vmin.xlane.f32.xlu0 %v1214
      %v1216 = vpop.xlane.xlu0 %1215
      %vm1217 = vcmp.eq.f32.partialorder %v1214, %v1216
      %v1218 = vsel %vm1217, %v1213, inf
      %1219 = vmin.xlane.f32.xlu0 %v1218
      %v1220 = vpop.xlane.xlu0 %1219
      %v1221 = vcvt.f32.s32 %v1220
      %v1222 = vcvt.f32.s32 %v1216
      %v1223 = vshll.u32 %v1222, 16
      %v1224 = vadd.s32 %v1223, %v1221
      %vm1225 = vcmp.eq.s32.totalorder %v587, %v1184
      %v1226 = vadd.s32 %v1204, 8
      %vm1227 = vcmp.eq.s32.totalorder %v587, %v1226
      %vm1228 = vmor %vm1225, %vm1227
      %v1229 = vadd.s32 %v1224, 16
      %vm1230 = vcmp.eq.s32.totalorder %v587, %v1229
      %vm1231 = vmor %vm1228, %vm1230
      %v1232 = vsel %vm1231, 1, 0
      %v1233 = vcvt.s32.f32 %v1232
      %s1234 = scalar_lea.vmem %s5, 72
      %v1235 = vld [vmem:[%s1234] sm:$0xff]
      %v1236 = vld [vmem:[%s1234 + $0x8] sm:$0xff]
      %v1237 = vld [vmem:[%s1234 + $0x10] sm:$0xff]
      %v1238 = vld [vmem:[%s1234 + $0x18] sm:$0xff]
      %v1239 = vld [vmem:[%s1234 + $0x20] sm:$0xff]
      %v1240 = vld [vmem:[%s1234 + $0x28] sm:$0xff]
      %v1241 = vld [vmem:[%s1234 + $0x30] sm:$0xff]
      %v1242 = vld [vmem:[%s1234 + $0x38] sm:$0xff]
      %v1243 = vld [vmem:[%s1234 + $0x40] sm:$0xff]
      %s1244 = scalar_lea.vmem %s6, 72
      %v1245 = vld [vmem:[%s1244] sm:$0xff]
      %v1246 = vld [vmem:[%s1244 + $0x8] sm:$0xff]
      %v1247 = vld [vmem:[%s1244 + $0x10] sm:$0xff]
      %v1248 = vld [vmem:[%s1244 + $0x18] sm:$0xff]
      %v1249 = vld [vmem:[%s1244 + $0x20] sm:$0xff]
      %v1250 = vld [vmem:[%s1244 + $0x28] sm:$0xff]
      %v1251 = vld [vmem:[%s1244 + $0x30] sm:$0xff]
      %v1252 = vld [vmem:[%s1244 + $0x38] sm:$0xff]
      %v1253 = vld [vmem:[%s1244 + $0x40] sm:$0xff]
      %v1255 = vsel %vm678, %v1233, 0
      %1257 = vmatprep.subr.mxu0 %v1246
      %1258 = vmatpush1.msra.mxu0 %v1245
      %1259 = vmatprep.subr.mxu0 %v1249
      %1260 = vmatpush1.msra.mxu0 %v1248
      %1261 = vmatprep.subr.mxu0 %v1252
      %1262 = vmatpush1.msra.mxu0 %v1251
      %1263 = vmatprep.subr.mxu0 0.0
      %1264 = vmatpush1.msra.mxu0 0.0
      %1265 = vmatprep.subr.mxu0 0.0
      %1266 = vmatpush1.msra.mxu0 0.0
      %1267 = vmatprep.subr.mxu0 0.0
      %1268 = vmatpush1.msra.mxu0 0.0
      %1269 = vmatprep.subr.mxu0 0.0
      %1270 = vmatpush1.msra.mxu0 0.0
      %1271 = vmatprep.subr.mxu0 0.0
      %1272 = vmatpush1.msra.mxu0 0.0
      %1273 = vmatprep.subr.mxu0 0.0
      %1274 = vmatpush1.msra.mxu0 0.0
      %1275 = vmatprep.subr.mxu0 0.0
      %1276 = vmatpush1.msra.mxu0 0.0
      %1277 = vmatprep.subr.mxu0 0.0
      %1278 = vmatpush1.msra.mxu0 0.0
      %1279 = vmatprep.subr.mxu0 0.0
      %1280 = vmatpush1.msra.mxu0 0.0
      %1281 = vmatprep.subr.mxu0 0.0
      %1282 = vmatpush1.msra.mxu0 0.0
      %1283 = vmatprep.subr.mxu0 0.0
      %1284 = vmatpush1.msra.mxu0 0.0
      %1285 = vmatprep.subr.mxu0 0.0
      %1286 = vmatpush1.msra.mxu0 0.0
      %1287 = vmatprep.subr.mxu0 0.0
      %1288 = vmatpush1.msra.mxu0 0.0
      %1289 = vmatprep.subr.mxu0 0.0
      %1290 = vmatpush1.msra.mxu0 0.0
      %1291 = vmatprep.subr.mxu0 0.0
      %1292 = vmatpush1.msra.mxu0 0.0
      %1293 = vmatprep.subr.mxu0 0.0
      %1294 = vmatpush1.msra.mxu0 0.0
      %1295 = vmatprep.subr.mxu0 0.0
      %1296 = vmatpush1.msra.mxu0 0.0
      %1297 = vmatprep.subr.mxu0 0.0
      %1298 = vmatpush1.msra.mxu0 0.0
      %1299 = vmatprep.subr.mxu0 0.0
      %1300 = vmatpush1.msra.mxu0 0.0
      %1301 = vmatprep.subr.mxu0 0.0
      %1302 = vmatpush1.msra.mxu0 0.0
      %1303 = vmatprep.subr.mxu0 0.0
      %1304 = vmatpush1.msra.mxu0 0.0
      %1305 = vmatprep.subr.mxu0 0.0
      %1306 = vmatpush1.msra.mxu0 0.0
      %1307 = vmatprep.subr.mxu0 0.0
      %1308 = vmatpush1.msra.mxu0 0.0
      %1309 = vmatprep.subr.mxu0 0.0
      %1310 = vmatpush1.msra.mxu0 0.0
      %1311 = vmatprep.subr.mxu0 0.0
      %1312 = vmatpush1.msra.mxu0 0.0
      %1313 = vmatprep.subr.mxu0 0.0
      %1314 = vmatpush1.msra.mxu0 0.0
      %1315 = vmatprep.subr.mxu0 0.0
      %1316 = vmatpush1.msra.mxu0 0.0
      %1317 = vmatprep.subr.mxu0 0.0
      %1318 = vmatpush1.msra.mxu0 0.0
      %1319 = vmatprep.subr.mxu0 0.0
      %1320 = vmatpush1.msra.mxu0 0.0
      %1321 = vmatprep.mubr.f32.mxu0 0.0
      %1322 = vmatmul.mubr.f32.gmra.mrb[0].mxu0 %v1255
      %v1323 = vpop.f32.mrb[0].mxu0
      %v1324 = vadd.f32 0.0, %v1323
      %v1325 = vpop.f32.mrb[0].mxu0
      %v1326 = vadd.f32 0.0, %v1325
      %1327 = vdwg.mxu0
      %1328 = vmatprep.subr.mxu0 0.0
      %1329 = vmatpush1.msra.mxu0 %v1247
      %1330 = vmatprep.subr.mxu0 0.0
      %1331 = vmatpush1.msra.mxu0 %v1250
      %1332 = vmatprep.subr.mxu0 0.0
      %1333 = vmatpush1.msra.mxu0 %v1253
      %1334 = vmatprep.subr.mxu0 0.0
      %1335 = vmatpush1.msra.mxu0 0.0
      %1336 = vmatprep.subr.mxu0 0.0
      %1337 = vmatpush1.msra.mxu0 0.0
      %1338 = vmatprep.subr.mxu0 0.0
      %1339 = vmatpush1.msra.mxu0 0.0
      %1340 = vmatprep.subr.mxu0 0.0
      %1341 = vmatpush1.msra.mxu0 0.0
      %1342 = vmatprep.subr.mxu0 0.0
      %1343 = vmatpush1.msra.mxu0 0.0
      %1344 = vmatprep.subr.mxu0 0.0
      %1345 = vmatpush1.msra.mxu0 0.0
      %1346 = vmatprep.subr.mxu0 0.0
      %1347 = vmatpush1.msra.mxu0 0.0
      %1348 = vmatprep.subr.mxu0 0.0
      %1349 = vmatpush1.msra.mxu0 0.0
      %1350 = vmatprep.subr.mxu0 0.0
      %1351 = vmatpush1.msra.mxu0 0.0
      %1352 = vmatprep.subr.mxu0 0.0
      %1353 = vmatpush1.msra.mxu0 0.0
      %1354 = vmatprep.subr.mxu0 0.0
      %1355 = vmatpush1.msra.mxu0 0.0
      %1356 = vmatprep.subr.mxu0 0.0
      %1357 = vmatpush1.msra.mxu0 0.0
      %1358 = vmatprep.subr.mxu0 0.0
      %1359 = vmatpush1.msra.mxu0 0.0
      %1360 = vmatprep.subr.mxu0 0.0
      %1361 = vmatpush1.msra.mxu0 0.0
      %1362 = vmatprep.subr.mxu0 0.0
      %1363 = vmatpush1.msra.mxu0 0.0
      %1364 = vmatprep.subr.mxu0 0.0
      %1365 = vmatpush1.msra.mxu0 0.0
      %1366 = vmatprep.subr.mxu0 0.0
      %1367 = vmatpush1.msra.mxu0 0.0
      %1368 = vmatprep.subr.mxu0 0.0
      %1369 = vmatpush1.msra.mxu0 0.0
      %1370 = vmatprep.subr.mxu0 0.0
      %1371 = vmatpush1.msra.mxu0 0.0
      %1372 = vmatprep.subr.mxu0 0.0
      %1373 = vmatpush1.msra.mxu0 0.0
      %1374 = vmatprep.subr.mxu0 0.0
      %1375 = vmatpush1.msra.mxu0 0.0
      %1376 = vmatprep.subr.mxu0 0.0
      %1377 = vmatpush1.msra.mxu0 0.0
      %1378 = vmatprep.subr.mxu0 0.0
      %1379 = vmatpush1.msra.mxu0 0.0
      %1380 = vmatprep.subr.mxu0 0.0
      %1381 = vmatpush1.msra.mxu0 0.0
      %1382 = vmatprep.subr.mxu0 0.0
      %1383 = vmatpush1.msra.mxu0 0.0
      %1384 = vmatprep.subr.mxu0 0.0
      %1385 = vmatpush1.msra.mxu0 0.0
      %1386 = vmatprep.subr.mxu0 0.0
      %1387 = vmatpush1.msra.mxu0 0.0
      %1388 = vmatprep.subr.mxu0 0.0
      %1389 = vmatpush1.msra.mxu0 0.0
      %1390 = vmatprep.subr.mxu0 0.0
      %1391 = vmatpush1.msra.mxu0 0.0
      %1392 = vmatprep.mubr.f32.mxu0 0.0
      %1393 = vmatmul.mubr.f32.gmra.mrb[0].mxu0 %v1255
      %v1394 = vpop.f32.mrb[0].mxu0
      %v1395 = vadd.f32 0.0, %v1394
      %v1396 = vpop.f32.mrb[0].mxu0
      %1397 = vdwg.mxu0
      %1398 = vmatprep.subr.mxu0 %v1236
      %1399 = vmatpush1.msra.mxu0 %v1235
      %1400 = vmatprep.subr.mxu0 %v1239
      %1401 = vmatpush1.msra.mxu0 %v1238
      %1402 = vmatprep.subr.mxu0 %v1242
      %1403 = vmatpush1.msra.mxu0 %v1241
      %1404 = vmatprep.subr.mxu0 0.0
      %1405 = vmatpush1.msra.mxu0 0.0
      %1406 = vmatprep.subr.mxu0 0.0
      %1407 = vmatpush1.msra.mxu0 0.0
      %1408 = vmatprep.subr.mxu0 0.0
      %1409 = vmatpush1.msra.mxu0 0.0
      %1410 = vmatprep.subr.mxu0 0.0
      %1411 = vmatpush1.msra.mxu0 0.0
      %1412 = vmatprep.subr.mxu0 0.0
      %1413 = vmatpush1.msra.mxu0 0.0
      %1414 = vmatprep.subr.mxu0 0.0
      %1415 = vmatpush1.msra.mxu0 0.0
      %1416 = vmatprep.subr.mxu0 0.0
      %1417 = vmatpush1.msra.mxu0 0.0
      %1418 = vmatprep.subr.mxu0 0.0
      %1419 = vmatpush1.msra.mxu0 0.0
      %1420 = vmatprep.subr.mxu0 0.0
      %1421 = vmatpush1.msra.mxu0 0.0
      %1422 = vmatprep.subr.mxu0 0.0
      %1423 = vmatpush1.msra.mxu0 0.0
      %1424 = vmatprep.subr.mxu0 0.0
      %1425 = vmatpush1.msra.mxu0 0.0
      %1426 = vmatprep.subr.mxu0 0.0
      %1427 = vmatpush1.msra.mxu0 0.0
      %1428 = vmatprep.subr.mxu0 0.0
      %1429 = vmatpush1.msra.mxu0 0.0
      %1430 = vmatprep.subr.mxu0 0.0
      %1431 = vmatpush1.msra.mxu0 0.0
      %1432 = vmatprep.subr.mxu0 0.0
      %1433 = vmatpush1.msra.mxu0 0.0
      %1434 = vmatprep.subr.mxu0 0.0
      %1435 = vmatpush1.msra.mxu0 0.0
      %1436 = vmatprep.subr.mxu0 0.0
      %1437 = vmatpush1.msra.mxu0 0.0
      %1438 = vmatprep.subr.mxu0 0.0
      %1439 = vmatpush1.msra.mxu0 0.0
      %1440 = vmatprep.subr.mxu0 0.0
      %1441 = vmatpush1.msra.mxu0 0.0
      %1442 = vmatprep.subr.mxu0 0.0
      %1443 = vmatpush1.msra.mxu0 0.0
      %1444 = vmatprep.subr.mxu0 0.0
      %1445 = vmatpush1.msra.mxu0 0.0
      %1446 = vmatprep.subr.mxu0 0.0
      %1447 = vmatpush1.msra.mxu0 0.0
      %1448 = vmatprep.subr.mxu0 0.0
      %1449 = vmatpush1.msra.mxu0 0.0
      %1450 = vmatprep.subr.mxu0 0.0
      %1451 = vmatpush1.msra.mxu0 0.0
      %1452 = vmatprep.subr.mxu0 0.0
      %1453 = vmatpush1.msra.mxu0 0.0
      %1454 = vmatprep.subr.mxu0 0.0
      %1455 = vmatpush1.msra.mxu0 0.0
      %1456 = vmatprep.subr.mxu0 0.0
      %1457 = vmatpush1.msra.mxu0 0.0
      %1458 = vmatprep.subr.mxu0 0.0
      %1459 = vmatpush1.msra.mxu0 0.0
      %1460 = vmatprep.subr.mxu0 0.0
      %1461 = vmatpush1.msra.mxu0 0.0
      %1462 = vmatprep.mubr.f32.mxu0 0.0
      %1463 = vmatmul.mubr.f32.gmra.mrb[0].mxu0 %v1255
      %v1464 = vpop.f32.mrb[0].mxu0
      %v1465 = vadd.f32 %v1324, %v1464
      %v1466 = vpop.f32.mrb[0].mxu0
      %v1467 = vadd.f32 %v1326, %v1466
      %1468 = vdwg.mxu0
      %1469 = vmatprep.subr.mxu0 0.0
      %1470 = vmatpush1.msra.mxu0 %v1237
      %1471 = vmatprep.subr.mxu0 0.0
      %1472 = vmatpush1.msra.mxu0 %v1240
      %1473 = vmatprep.subr.mxu0 0.0
      %1474 = vmatpush1.msra.mxu0 %v1243
      %1475 = vmatprep.subr.mxu0 0.0
      %1476 = vmatpush1.msra.mxu0 0.0
      %1477 = vmatprep.subr.mxu0 0.0
      %1478 = vmatpush1.msra.mxu0 0.0
      %1479 = vmatprep.subr.mxu0 0.0
      %1480 = vmatpush1.msra.mxu0 0.0
      %1481 = vmatprep.subr.mxu0 0.0
      %1482 = vmatpush1.msra.mxu0 0.0
      %1483 = vmatprep.subr.mxu0 0.0
      %1484 = vmatpush1.msra.mxu0 0.0
      %1485 = vmatprep.subr.mxu0 0.0
      %1486 = vmatpush1.msra.mxu0 0.0
      %1487 = vmatprep.subr.mxu0 0.0
      %1488 = vmatpush1.msra.mxu0 0.0
      %1489 = vmatprep.subr.mxu0 0.0
      %1490 = vmatpush1.msra.mxu0 0.0
      %1491 = vmatprep.subr.mxu0 0.0
      %1492 = vmatpush1.msra.mxu0 0.0
      %1493 = vmatprep.subr.mxu0 0.0
      %1494 = vmatpush1.msra.mxu0 0.0
      %1495 = vmatprep.subr.mxu0 0.0
      %1496 = vmatpush1.msra.mxu0 0.0
      %1497 = vmatprep.subr.mxu0 0.0
      %1498 = vmatpush1.msra.mxu0 0.0
      %1499 = vmatprep.subr.mxu0 0.0
      %1500 = vmatpush1.msra.mxu0 0.0
      %1501 = vmatprep.subr.mxu0 0.0
      %1502 = vmatpush1.msra.mxu0 0.0
      %1503 = vmatprep.subr.mxu0 0.0
      %1504 = vmatpush1.msra.mxu0 0.0
      %1505 = vmatprep.subr.mxu0 0.0
      %1506 = vmatpush1.msra.mxu0 0.0
      %1507 = vmatprep.subr.mxu0 0.0
      %1508 = vmatpush1.msra.mxu0 0.0
      %1509 = vmatprep.subr.mxu0 0.0
      %1510 = vmatpush1.msra.mxu0 0.0
      %1511 = vmatprep.subr.mxu0 0.0
      %1512 = vmatpush1.msra.mxu0 0.0
      %1513 = vmatprep.subr.mxu0 0.0
      %1514 = vmatpush1.msra.mxu0 0.0
      %1515 = vmatprep.subr.mxu0 0.0
      %1516 = vmatpush1.msra.mxu0 0.0
      %1517 = vmatprep.subr.mxu0 0.0
      %1518 = vmatpush1.msra.mxu0 0.0
      %1519 = vmatprep.subr.mxu0 0.0
      %1520 = vmatpush1.msra.mxu0 0.0
      %1521 = vmatprep.subr.mxu0 0.0
      %1522 = vmatpush1.msra.mxu0 0.0
      %1523 = vmatprep.subr.mxu0 0.0
      %1524 = vmatpush1.msra.mxu0 0.0
      %1525 = vmatprep.subr.mxu0 0.0
      %1526 = vmatpush1.msra.mxu0 0.0
      %1527 = vmatprep.subr.mxu0 0.0
      %1528 = vmatpush1.msra.mxu0 0.0
      %1529 = vmatprep.subr.mxu0 0.0
      %1530 = vmatpush1.msra.mxu0 0.0
      %1531 = vmatprep.subr.mxu0 0.0
      %1532 = vmatpush1.msra.mxu0 0.0
      %1533 = vmatprep.mubr.f32.mxu0 0.0
      %1534 = vmatmul.mubr.f32.gmra.mrb[0].mxu0 %v1255
      %v1535 = vpop.f32.mrb[0].mxu0
      %v1536 = vadd.f32 %v1395, %v1535
      %v1537 = vpop.f32.mrb[0].mxu0
      %1538 = vdwg.mxu0
      %1539 = vst [vmem:[%s375] sm:$0xff] %v890
      %1540 = vst [vmem:[%s375 + $0x8] sm:$0xff] %v1465
      %1541 = vst [vmem:[%s375 + $0x10] sm:$0xff] %v892
      %1542 = vst [vmem:[%s375 + $0x18] sm:$0xff] %v1467
      %1543 = vst [vmem:[%s375 + $0x20] sm:$0xff] %v961
      %1544 = vst [vmem:[%s375 + $0x28] sm:$0xff] %v1536
      %v1545 = vmul.u32 %v1184, 16
      %v1546 = vadd.s32 %v604, %v1545
      %v1547 = vmul.u32 %v627, 256
      %v1548 = vadd.s32 %v1546, %v1547
      %v1549 = vmul.u32 %v1204, 4096
      %v1550 = vadd.s32 %v1548, %v1549
      %v1551 = vmul.u32 %v650, 65536
      %v1552 = vadd.s32 %v1550, %v1551
      %v1553 = vmul.u32 %v1224, 1048576
      %v1554 = vadd.s32 %v1552, %v1553
      %vm1555 = vcmask 7168
      %1556 = vst.msk [vmem:[%s379] sm:$0xff] %vm1555, %v1554
      %s1557 = smul.u32 %s21, 8
      %v1558 = vlaneseq
      %v1559 = vshrl.u32 %v1558, 7
      %v1560 = vstv %s1557
      %v1561 = vadd.s32 %v1560, %v1559
      %vm1562 = vcmp.lt.s32.totalorder %v1561, 2
      %v1563 = vsel %vm1562, 1, 0
      %v1564 = vcvt.s32.f32 %v1563
      %v1565 = vmul.f32 %v964, %v964
      %v1566 = vmul.f32 %v965, %v965
      %v1567 = vmul.f32 %v966, %v966
      %v1568 = vadd.f32 %v1565, %v1566
      %v1569 = vadd.f32 %v1568, %v1567
      %1570 = vadd.xlane.f32.xlu0 %v1569
      %v1571 = vpop.xlane.xlu0 %1570
      %v1572 = vsub.f32 %v1465, %v964
      %v1573 = vsub.f32 %v1467, %v965
      %v1574 = vsub.f32 %v1536, %v966
      %v1575 = vmul.f32 %v1572, %v1572
      %v1576 = vmul.f32 %v1573, %v1573
      %v1577 = vmul.f32 %v1574, %v1574
      %v1578 = vadd.f32 %v1575, %v1576
      %v1579 = vadd.f32 %v1578, %v1577
      %1580 = vadd.xlane.f32.xlu0 %v1579
      %v1581 = vpop.xlane.xlu0 %1580
      %v1582 = vadd.f32 %v1571, %v1581
      %v1583 = vmul.f32 %v1564, %v1582
      %v1584 = vsel %vm1555, %v1583, 0.0
      %1585 = vadd.xlane.f32.xlu0 %v1584
      %v1586 = vpop.xlane.xlu0 %1585
      %v1587 = vrot.slane %v1586, 4
      %v1588 = vadd.f32 %v1586, %v1587
      %v1589 = vrot.slane %v1588, 2
      %v1590 = vadd.f32 %v1588, %v1589
      %v1591 = vrot.slane %v1590, 1
      %v1592 = vadd.f32 %v1590, %v1591
      %s1593 = vtos %v1592
      %v1594 = vstv %s1593
      %1595 = vst [vmem:[%s382] sm:$0x1] %v1594
      %p1596 = scmp.lt.s32.totalorder %s21, 1
      %s1597 = scalar_select %p1596, %s21, 1
      %s1598 = smul.addr %s1597, 6
      %s1599 = smul.addr %s1598, 8
      %s1600 = scalar_lea.vmem %s7, %s1599
      %p1601 = scmp.lt.s32.totalorder %s21, 1
      %s1602 = scalar_select %p1601, %s21, 1
      %s1603 = smul.addr %s1602, 8
      %s1604 = scalar_lea.vmem %s8, %s1603
      %p1605 = scmp.lt.s32.totalorder %s21, 1
      %s1606 = scalar_select %p1605, %s21, 1
      %s1607 = scalar_lea.vmem %s9, %s1606
      // Predicated region
      $region49: #{srvq3_forward.1} parent=47 // pred_check
        %p1608 = pneg %p201
      $region50: #{srvq3_forward.1} parent=47 // pred_check_branch
        %1610 = sbr.rel (%p1608) target = $region52
      $region51: #{srvq3_forward.1} parent=47 // pred_region
        _
      $region52: #{srvq3_forward.1} parent=47 // pred_fallthru
        _
      // Predicated region
      $region53: #{srvq3_forward.1} parent=47 // pred_check
        %p1611 = pneg %p227
      $region54: #{srvq3_forward.1} parent=47 // pred_check_branch
        %1613 = sbr.rel (%p1611) target = $region56
      $region55: #{srvq3_forward.1} parent=47 // pred_region
        _
      $region56: #{srvq3_forward.1} parent=47 // pred_fallthru
        _
      // Predicated region
      $region57: #{srvq3_forward.1} parent=47 // pred_check
        %p1614 = pneg %p253
      $region58: #{srvq3_forward.1} parent=47 // pred_check_branch
        %1616 = sbr.rel (%p1614) target = $region60
      $region59: #{srvq3_forward.1} parent=47 // pred_region
        _
      $region60: #{srvq3_forward.1} parent=47 // pred_fallthru
        _
    $region48: #{srvq3_forward.1} parent=5 // pred_fallthru
      _
    %p1617 = scmp.le.s32.totalorder 2, %s16
    // Predicated region
    $region61: #{srvq3_forward.1} parent=5 // pred_check
      %p1618 = pneg %p1617
    $region62: #{srvq3_forward.1} parent=5 // pred_check_branch
      %1620 = sbr.rel (%p1618) target = $region64
    $region63: #{srvq3_forward.1} parent=5 // pred_region
      %s1621 = ssub.s32 %s16, 2
      // Predicated region
      $region65: #{srvq3_forward.1} parent=63 // pred_check
        %p1622 = pneg %p207
      $region66: #{srvq3_forward.1} parent=63 // pred_check_branch
        %1624 = sbr.rel (%p1622) target = $region68
      $region67: #{srvq3_forward.1} parent=63 // pred_region
        %p1625 = scmp.lt.s32.totalorder %s22, 1
        %s1626 = scalar_select %p1625, %s22, 1
        %s1627 = smul.addr %s1626, 6
        %s1628 = smul.addr %s1627, 8
        %s1629 = scalar_lea.vmem %s7, %s1628
      $region68: #{srvq3_forward.1} parent=63 // pred_fallthru
        _
      // Predicated region
      $region69: #{srvq3_forward.1} parent=63 // pred_check
        %p1630 = pneg %p233
      $region70: #{srvq3_forward.1} parent=63 // pred_check_branch
        %1632 = sbr.rel (%p1630) target = $region72
      $region71: #{srvq3_forward.1} parent=63 // pred_region
        %p1633 = scmp.lt.s32.totalorder %s22, 1
        %s1634 = scalar_select %p1633, %s22, 1
        %s1635 = smul.addr %s1634, 8
        %s1636 = scalar_lea.vmem %s8, %s1635
      $region72: #{srvq3_forward.1} parent=63 // pred_fallthru
        _
      // Predicated region
      $region73: #{srvq3_forward.1} parent=63 // pred_check
        %p1637 = pneg %p259
      $region74: #{srvq3_forward.1} parent=63 // pred_check_branch
        %1639 = sbr.rel (%p1637) target = $region76
      $region75: #{srvq3_forward.1} parent=63 // pred_region
        %p1640 = scmp.lt.s32.totalorder %s22, 1
        %s1641 = scalar_select %p1640, %s22, 1
        %s1642 = scalar_lea.vmem %s9, %s1641
      $region76: #{srvq3_forward.1} parent=63 // pred_fallthru
        _
    $region64: #{srvq3_forward.1} parent=5 // pred_fallthru
      _
  $region6: #{srvq3_forward.1} parent=0 // loop_footer
    %s20 = sadd.s32 1, %s16
  $region7: #{srvq3_forward.1} parent=0 // loop_footer_branch
    %15 = sbr.rel target = $region3
  $region8: #{srvq3_forward.1} parent=0 // loop_exit
    _

</llo_original>
